<compile_context>
chip_gen: v5e
topology: v5e:2x2
jax: 0.10.0
libtpu: 0.0.40
codegen_flags: <defaults>
</compile_context>

<pallas_src>
import numpy as np
import jax
import jax.numpy as jnp
from jax.experimental import pallas as pl
from jax.experimental.pallas import tpu as pltpu

NUM_CLASSES = 17  # hard-coded in the reference module (F.one_hot(..., 17))


# --------------------------------------------------------------------------
# Pallas kernel: grid = (bs, L // TL); batch parallel, L reduction arbitrary.
# --------------------------------------------------------------------------
def _cp_loss_kernel(logits_ref, labels_ref, p_ref, t_ref, score_ref, out_ref,
                    inter_ref, sump_ref, sumt_ref, ib_ref, sumpb_ref, bce_ref):
    k = pl.program_id(1)
    n_l = pl.num_programs(1)

    @pl.when(k == 0)
    def _init():
        inter_ref[...] = jnp.zeros_like(inter_ref)
        sump_ref[...] = jnp.zeros_like(sump_ref)
        sumt_ref[...] = jnp.zeros_like(sumt_ref)
        ib_ref[...] = jnp.zeros_like(ib_ref)
        sumpb_ref[...] = jnp.zeros_like(sumpb_ref)
        bce_ref[...] = jnp.zeros_like(bce_ref)

    # ---- per-L-tile work: five independent row reductions + BCE rows ------
    p = p_ref[...]                          # (S, TL) f32
    tb = t_ref[...] > 0.5                   # bf16 compare -> bool (targets binary)
    t = tb.astype(jnp.float32)
    pb = p >= 0.5

    # BCE single-log pass (valid because targets are {0,1})
    q = jnp.where(tb, p, 1.0 - p)
    bce_ref[...] += jnp.sum(jnp.maximum(jnp.log(q), -100.0), axis=-1, keepdims=True)

    inter_ref[...] += jnp.sum(p * t, axis=-1, keepdims=True)
    sump_ref[...] += jnp.sum(p, axis=-1, keepdims=True)
    sumt_ref[...] += jnp.sum(t, axis=-1, keepdims=True)
    ib_ref[...] += jnp.sum((pb & tb).astype(jnp.float32), axis=-1, keepdims=True)
    sumpb_ref[...] += jnp.sum(pb.astype(jnp.float32), axis=-1, keepdims=True)

    # ---- finalize on the last L tile: CE / dice / IoU / score + write -----
    @pl.when(k == n_l - 1)
    def _finalize():
        S = p_ref.shape[0]
        l_total = jnp.asarray(n_l * p_ref.shape[1], dtype=jnp.float32)
        inv_s = 1.0 / jnp.float32(S)

        # CrossEntropy on native (C, S) layout: reduce over the class
        # (sublane) axis, labels gathered via an iota compare.
        # NOTE: labels outside [0, NUM_CLASSES) silently gather 0.
        logits = logits_ref[...]                                   # (C, S) f32
        lab = labels_ref[...]                                      # (1, S) int32
        m = jnp.max(logits, axis=0, keepdims=True)                 # (1, S)
        lse = jnp.log(jnp.sum(jnp.exp(logits - m), axis=0, keepdims=True)) + m
        cls = jax.lax.broadcasted_iota(jnp.int32, logits.shape, 0)
        gathered = jnp.sum(jnp.where(cls == lab, logits, 0.0),
                           axis=0, keepdims=True)                  # (1, S)
        loss_class = jnp.sum(lse - gathered) * inv_s

        inter = inter_ref[...]
        sum_p = sump_ref[...]
        sum_t = sumt_ref[...]
        ib = ib_ref[...]
        sum_pb = sumpb_ref[...]

        loss_bce = -jnp.sum(bce_ref[...]) / (jnp.float32(S) * l_total)
        loss_dice = jnp.sum(1.0 - (2.0 * inter + 1.0)
                            / (sum_p + sum_t + 1.0)) * inv_s
        loss_mask = loss_bce + loss_dice

        # IoU (tb == t since targets are binary) + masked MSE over selected rows
        iou = ib / (sum_t + sum_pb - ib + 1e-6)                    # (S, 1)
        sel = (iou > 0.5).astype(jnp.float32)
        sq = (score_ref[...] - iou) ** 2                           # (S, 1)
        cnt = jnp.sum(sel)
        loss_score = jnp.where(cnt > 0.0,
                               jnp.sum(sel * sq) / jnp.maximum(cnt, 1.0), 0.0)

        total = loss_class + 10.0 * loss_mask + 10.0 * loss_score

        # lane-dense (8, 128) output block; lanes 0..3 of row 0 carry values
        sub = jax.lax.broadcasted_iota(jnp.int32, out_ref.shape, 0)
        lane = jax.lax.broadcasted_iota(jnp.int32, out_ref.shape, 1)
        row0 = sub == 0
        outv = jnp.where(row0 & (lane == 0), total, 0.0)
        outv = jnp.where(row0 & (lane == 1), loss_class, outv)
        outv = jnp.where(row0 & (lane == 2), loss_mask, outv)
        outv = jnp.where(row0 & (lane == 3), loss_score, outv)
        out_ref[...] = outv


def _pick_tl(S, L):
    """Largest L-tile (multiple of 128, divides L) within the v7x VMEM budget."""
    budget = 24 * 1024 * 1024  # 2 bufs x (f32 + bf16) per-tile bytes, v7x-safe
    for cand in (2048, 1024, 512, 256, 128):
        if L % cand == 0 and 2 * S * cand * 6 <= budget:
            return cand
    return L  # small / irregular L: single full-width block


def _cp_loss_pallas(logits, labels3, pred_masks, sampl_masks_bf16, score3):
    bs, C, S = logits.shape
    L = pred_masks.shape[-1]
    TL = _pick_tl(S, L)
    n_l = L // TL

    tile_bytes = S * TL * (4 + 2)
    vmem_limit = int(min(max(4 * tile_bytes + (2 << 20), 32 << 20), 64 << 20))

    out = pl.pallas_call(
        _cp_loss_kernel,
        out_shape=jax.ShapeDtypeStruct((bs, 8, 128), jnp.float32),
        grid_spec=pltpu.PrefetchScalarGridSpec(
            num_scalar_prefetch=0,
            grid=(bs, n_l),
            in_specs=[
                pl.BlockSpec((None, C, S), lambda b, k: (b, 0, 0)),    # logits
                pl.BlockSpec((None, 1, S), lambda b, k: (b, 0, 0)),    # labels
                pl.BlockSpec((None, S, TL), lambda b, k: (b, 0, k)),   # pred masks
                pl.BlockSpec((None, S, TL), lambda b, k: (b, 0, k)),   # gt masks bf16
                pl.BlockSpec((None, S, 1), lambda b, k: (b, 0, 0)),    # score
            ],
            out_specs=pl.BlockSpec((None, 8, 128), lambda b, k: (b, 0, 0)),
            scratch_shapes=[pltpu.VMEM((S, 1), jnp.float32) for _ in range(6)],
        ),
        compiler_params=pltpu.CompilerParams(
            dimension_semantics=("parallel", "arbitrary"),
            vmem_limit_bytes=vmem_limit),
    )(logits, labels3, pred_masks, sampl_masks_bf16, score3)
    return out[:, 0, :4]                                            # (bs, 4)


# --------------------------------------------------------------------------
# JAX glue: sampled labels / masks (torch.nonzero / where first-match gather)
# TODO(synk): the data-dependent per-sample first-match gather stays in XLA;
# it has no clean fixed-shape Pallas equivalent.
# --------------------------------------------------------------------------
def _prep_one(gt_m, gt_l, idx):
    """gt_m: (N, L), gt_l: (N,), idx: (S,) -> (sampl_masks (S,L) bf16, labels (S,) i32)."""
    valid = gt_l != -1.0
    lab = jnp.where(valid, gt_l, 0.0)
    labels_map = jnp.sum(gt_m * lab[:, None], axis=0)                 # (L,)
    sampl_labels = labels_map[idx]                                    # (S,)
    # emulate: all_labels = cat([0], g_labels); all_masks = cat([zeros], g_masks)
    all_labels = jnp.concatenate(
        [jnp.zeros((1,), jnp.float32), jnp.where(valid, gt_l, -999.0)])
    all_masks = jnp.concatenate(
        [jnp.zeros((1, gt_m.shape[1]), jnp.bfloat16),
         gt_m.astype(jnp.bfloat16)], axis=0)                          # bf16 ({0,1} exact)
    match = all_labels[None, :] == sampl_labels[:, None]              # (S, N+1)
    masks_idx = jnp.argmax(match, axis=1)                             # first match
    sampl_masks = all_masks[masks_idx]                                # (S, L) bf16
    return sampl_masks, sampl_labels.astype(jnp.int32)


@jax.jit
def cp_loss_forward(gt_masks, gt_labels, pred_masks, pred_labels, score, all_idx):
    """Returns (loss, loss_class, loss_mask, loss_score) scalars, like CPLoss."""
    sampl_masks, sampl_labels = jax.vmap(_prep_one)(gt_masks, gt_labels, all_idx)
    labels3 = sampl_labels[:, None, :]                                # (bs, 1, S) i32
    score3 = score.astype(jnp.float32)                                # (bs, S, 1)
    per = _cp_loss_pallas(pred_labels.astype(jnp.float32),            # (bs, C, S)
                          labels3,
                          pred_masks.astype(jnp.float32),             # (bs, S, L)
                          sampl_masks,                                # (bs, S, L) bf16
                          score3)
    means = jnp.mean(per, axis=0)                                     # (4,)
    return means[0], means[1], means[2], means[3]


# --------------------------------------------------------------------------
# Pure-JAX reference (mirrors the PyTorch code, non-jitted, for verification)
# --------------------------------------------------------------------------
def _ref_forward(gt_masks, gt_labels, pred_masks, pred_labels, score, all_idx):
    bs = gt_masks.shape[0]
    loss = loss_class = loss_mask = loss_score = 0.0
    for i in range(bs):
        idx = jnp.nonzero(gt_labels[i] != -1)[0]
        g_masks = gt_masks[i][idx]
        g_labels = gt_labels[i][idx]
        labels = jnp.sum(g_masks * g_labels[:, None], axis=0)
        sampl_labels = labels[all_idx[i]]
        all_labels = jnp.concatenate([jnp.zeros((1,), jnp.float32), g_labels])
        all_masks = jnp.concatenate(
            [jnp.zeros((1, g_masks.shape[1]), jnp.float32), g_masks], axis=0)
        masks_idx = jnp.array(
            [int(jnp.nonzero(all_labels == item)[0][0]) for item in sampl_labels])
        sampl_masks = all_masks[masks_idx]
        p_masks = pred_masks[i]
        p_labels = pred_labels[i]
        p_score = score[i]
        one_hot = jax.nn.one_hot(sampl_labels.astype(jnp.int32), NUM_CLASSES)
        logsoft = jax.nn.log_softmax(p_labels, axis=0)
        loss_c = -jnp.sum(one_hot.T * logsoft) / sampl_labels.shape[0]
        loss_bce = -jnp.mean(
            sampl_masks * jnp.maximum(jnp.log(p_masks), -100.0)
            + (1.0 - sampl_masks) * jnp.maximum(jnp.log(1.0 - p_masks), -100.0))
        inter = jnp.sum(p_masks * sampl_masks, -1)
        denom = jnp.sum(p_masks, -1) + jnp.sum(sampl_masks, -1)
        loss_dice = jnp.mean(1.0 - (2.0 * inter + 1.0) / (denom + 1.0))
        loss_m = loss_bce + loss_dice
        pb = (p_masks >= 0.5).astype(jnp.float32)
        tb = (sampl_masks > 0.5).astype(jnp.float32)
        ib = jnp.sum(pb * tb, -1)
        ub = jnp.sum(tb, -1) + jnp.sum(pb, -1) - ib
        tgt = ib / (ub + 1e-6)
        fid = jnp.nonzero(tgt > 0.5)[0]
        loss_s = 0.0
        if fid.size:
            loss_s = jnp.mean((jnp.squeeze(p_score)[fid] - tgt[fid]) ** 2)
        loss = loss + loss_c + loss_m * 10 + loss_s * 10
        loss_class += loss_c
        loss_mask += loss_m
        loss_score += loss_s
    return loss / bs, loss_class / bs, loss_mask / bs, loss_score / bs


# --------------------------------------------------------------------------
if __name__ == "__main__":
    key = jax.random.PRNGKey(0)
    bs, N, L, S = 2, 4, 4096, 8        # batch, max gt objects, mask len, samples
    seg = L // N

    # gt masks: 4 disjoint segments per batch element
    gt_masks = np.zeros((bs, N, L), np.float32)
    for b in range(bs):
        for n in range(N):
            gt_masks[b, n, n * seg:(n + 1) * seg] = 1.0
    gt_masks = jnp.asarray(gt_masks)

    # gt labels in [1, 16], -1 = padding (ignored)
    gt_labels = jnp.asarray([[3.0, 7.0, -1.0, 12.0],
                             [1.0, -1.0, 5.0, 9.0]], jnp.float32)

    k1, k2, k3, k4, _ = jax.random.split(key, 5)
    all_idx = jax.random.randint(k1, (bs, S), 0, L)                   # sampled pixels
    pred_labels = jax.random.normal(k2, (bs, NUM_CLASSES, S), jnp.float32)
    score = jax.random.uniform(k3, (bs, S, 1), jnp.float32, 0.05, 0.95)

    # build sampled gt masks first so predicted masks are partially "good"
    sampl_masks_dbg, _ = jax.vmap(_prep_one)(gt_masks, gt_labels, all_idx)
    noise = jax.random.uniform(k4, (bs, S, L), jnp.float32, 0.0, 0.3)
    pred_masks = jnp.clip(
        0.7 * sampl_masks_dbg.astype(jnp.float32) + 0.05 + noise,
        1e-4, 1.0 - 1e-4)

    out = cp_loss_forward(gt_masks, gt_labels, pred_masks, pred_labels,
                          score, all_idx)
    out = jax.block_until_ready(out)

    ref = _ref_forward(gt_masks, gt_labels, pred_masks, pred_labels,
                       score, all_idx)

    for a, b in zip(out, ref):
        assert np.allclose(np.asarray(a), np.asarray(b), rtol=1e-4, atol=1e-5), (a, b)

    print("KERNEL_OK")
</pallas_src>

<mosaic_0001>
module attributes {stable_mosaic.version = 11 : i64} {
  func.func @_cp_loss_kernel(%arg0: i32, %arg1: i32, %arg2: memref<1x17x8xf32, #tpu.memory_space<vmem>>, %arg3: memref<1x1x8xi32, #tpu.memory_space<vmem>>, %arg4: memref<1x8x2048xf32, #tpu.memory_space<vmem>>, %arg5: memref<1x8x2048xbf16, #tpu.memory_space<vmem>>, %arg6: memref<1x8x1xf32, #tpu.memory_space<vmem>>, %arg7: memref<1x8x128xf32, #tpu.memory_space<vmem>>, %arg8: memref<8x1xf32, #tpu.memory_space<vmem>>, %arg9: memref<8x1xf32, #tpu.memory_space<vmem>>, %arg10: memref<8x1xf32, #tpu.memory_space<vmem>>, %arg11: memref<8x1xf32, #tpu.memory_space<vmem>>, %arg12: memref<8x1xf32, #tpu.memory_space<vmem>>, %arg13: memref<8x1xf32, #tpu.memory_space<vmem>>) attributes {dimension_semantics = [#tpu.dimension_semantics<parallel>, #tpu.dimension_semantics<arbitrary>], iteration_bounds = array<i64: 2, 2>, scalar_prefetch = 0 : i64, scratch_operands = 6 : i64, tpu.core_type = #tpu.core_type<tc>, window_params = [{transform_indices = @transform_0, window_bounds = array<i64: 1, 17, 8>}, {transform_indices = @transform_1, window_bounds = array<i64: 1, 1, 8>}, {transform_indices = @transform_2, window_bounds = array<i64: 1, 8, 2048>}, {transform_indices = @transform_3, window_bounds = array<i64: 1, 8, 2048>}, {transform_indices = @transform_4, window_bounds = array<i64: 1, 8, 1>}, {transform_indices = @transform_5, window_bounds = array<i64: 1, 8, 128>}]} {
    %c0_i32 = arith.constant 0 : i32
    %0 = arith.cmpi eq, %arg1, %c0_i32 : i32
    %1 = arith.extui %0 : i1 to i32
    %c0_i32_0 = arith.constant 0 : i32
    %2 = arith.cmpi ne, %1, %c0_i32_0 : i32
    scf.if %2 {
      %cst_40 = arith.constant 0.000000e+00 : f32
      %58 = vector.broadcast %cst_40 : f32 to vector<8x1xf32>
      %c0_41 = arith.constant 0 : index
      %c0_42 = arith.constant 0 : index
      %59 = vector.load %arg8[%c0_41, %c0_42] : memref<8x1xf32, #tpu.memory_space<vmem>>, vector<8x1xf32>
      tpu.vector_store %arg8[%c0_41, %c0_42], %58 {strides = array<i32>} : memref<8x1xf32, #tpu.memory_space<vmem>>, vector<8x1xf32>,
      %cst_43 = arith.constant 0.000000e+00 : f32
      %60 = vector.broadcast %cst_43 : f32 to vector<8x1xf32>
      %c0_44 = arith.constant 0 : index
      %c0_45 = arith.constant 0 : index
      %61 = vector.load %arg9[%c0_44, %c0_45] : memref<8x1xf32, #tpu.memory_space<vmem>>, vector<8x1xf32>
      tpu.vector_store %arg9[%c0_44, %c0_45], %60 {strides = array<i32>} : memref<8x1xf32, #tpu.memory_space<vmem>>, vector<8x1xf32>,
      %cst_46 = arith.constant 0.000000e+00 : f32
      %62 = vector.broadcast %cst_46 : f32 to vector<8x1xf32>
      %c0_47 = arith.constant 0 : index
      %c0_48 = arith.constant 0 : index
      %63 = vector.load %arg10[%c0_47, %c0_48] : memref<8x1xf32, #tpu.memory_space<vmem>>, vector<8x1xf32>
      tpu.vector_store %arg10[%c0_47, %c0_48], %62 {strides = array<i32>} : memref<8x1xf32, #tpu.memory_space<vmem>>, vector<8x1xf32>,
      %cst_49 = arith.constant 0.000000e+00 : f32
      %64 = vector.broadcast %cst_49 : f32 to vector<8x1xf32>
      %c0_50 = arith.constant 0 : index
      %c0_51 = arith.constant 0 : index
      %65 = vector.load %arg11[%c0_50, %c0_51] : memref<8x1xf32, #tpu.memory_space<vmem>>, vector<8x1xf32>
      tpu.vector_store %arg11[%c0_50, %c0_51], %64 {strides = array<i32>} : memref<8x1xf32, #tpu.memory_space<vmem>>, vector<8x1xf32>,
      %cst_52 = arith.constant 0.000000e+00 : f32
      %66 = vector.broadcast %cst_52 : f32 to vector<8x1xf32>
      %c0_53 = arith.constant 0 : index
      %c0_54 = arith.constant 0 : index
      %67 = vector.load %arg12[%c0_53, %c0_54] : memref<8x1xf32, #tpu.memory_space<vmem>>, vector<8x1xf32>
      tpu.vector_store %arg12[%c0_53, %c0_54], %66 {strides = array<i32>} : memref<8x1xf32, #tpu.memory_space<vmem>>, vector<8x1xf32>,
      %cst_55 = arith.constant 0.000000e+00 : f32
      %68 = vector.broadcast %cst_55 : f32 to vector<8x1xf32>
      %c0_56 = arith.constant 0 : index
      %c0_57 = arith.constant 0 : index
      %69 = vector.load %arg13[%c0_56, %c0_57] : memref<8x1xf32, #tpu.memory_space<vmem>>, vector<8x1xf32>
      tpu.vector_store %arg13[%c0_56, %c0_57], %68 {strides = array<i32>} : memref<8x1xf32, #tpu.memory_space<vmem>>, vector<8x1xf32>,
    } else {
    }
    %c0 = arith.constant 0 : index
    %c0_1 = arith.constant 0 : index
    %c0_2 = arith.constant 0 : index
    %3 = vector.load %arg4[%c0, %c0_1, %c0_2] : memref<1x8x2048xf32, #tpu.memory_space<vmem>>, vector<1x8x2048xf32>
    %4 = vector.shape_cast %3 : vector<1x8x2048xf32> to vector<8x2048xf32>
    %c0_3 = arith.constant 0 : index
    %c0_4 = arith.constant 0 : index
    %c0_5 = arith.constant 0 : index
    %5 = vector.load %arg5[%c0_3, %c0_4, %c0_5] : memref<1x8x2048xbf16, #tpu.memory_space<vmem>>, vector<1x8x2048xbf16>
    %6 = vector.shape_cast %5 : vector<1x8x2048xbf16> to vector<8x2048xbf16>
    %cst = arith.constant 5.000000e-01 : bf16
    %7 = vector.broadcast %cst : bf16 to vector<8x2048xbf16>
    %8 = arith.cmpf ogt, %6, %7 : vector<8x2048xbf16>
    %9 = arith.extui %8 : vector<8x2048xi1> to vector<8x2048xi32>
    %10 = arith.sitofp %9 : vector<8x2048xi32> to vector<8x2048xf32>
    %cst_6 = arith.constant 5.000000e-01 : f32
    %11 = vector.broadcast %cst_6 : f32 to vector<8x2048xf32>
    %12 = arith.cmpf oge, %4, %11 : vector<8x2048xf32>
    %cst_7 = arith.constant 1.000000e+00 : f32
    %13 = vector.broadcast %cst_7 : f32 to vector<8x2048xf32>
    %14 = arith.subf %13, %4 : vector<8x2048xf32>
    %15 = arith.select %8, %4, %14 : vector<8x2048xi1>, vector<8x2048xf32>
    %c0_8 = arith.constant 0 : index
    %c0_9 = arith.constant 0 : index
    %16 = vector.load %arg13[%c0_8, %c0_9] : memref<8x1xf32, #tpu.memory_space<vmem>>, vector<8x1xf32>
    %17 = math.log %15 : vector<8x2048xf32>
    %cst_10 = arith.constant -1.000000e+02 : f32
    %18 = vector.broadcast %cst_10 : f32 to vector<8x2048xf32>
    %19 = arith.maximumf %17, %18 : vector<8x2048xf32>
    %cst_11 = arith.constant dense<0.000000e+00> : vector<8xf32>
    %20 = vector.multi_reduction <add>, %19, %cst_11 [1] : vector<8x2048xf32> to vector<8xf32>
    %21 = vector.shape_cast %20 : vector<8xf32> to vector<8x1xf32>
    %22 = arith.addf %16, %21 : vector<8x1xf32>
    %c0_12 = arith.constant 0 : index
    %c0_13 = arith.constant 0 : index
    %23 = vector.load %arg13[%c0_12, %c0_13] : memref<8x1xf32, #tpu.memory_space<vmem>>, vector<8x1xf32>
    tpu.vector_store %arg13[%c0_12, %c0_13], %22 {strides = array<i32>} : memref<8x1xf32, #tpu.memory_space<vmem>>, vector<8x1xf32>,
    %c0_14 = arith.constant 0 : index
    %c0_15 = arith.constant 0 : index
    %24 = vector.load %arg8[%c0_14, %c0_15] : memref<8x1xf32, #tpu.memory_space<vmem>>, vector<8x1xf32>
    %25 = arith.mulf %4, %10 : vector<8x2048xf32>
    %cst_16 = arith.constant dense<0.000000e+00> : vector<8xf32>
    %26 = vector.multi_reduction <add>, %25, %cst_16 [1] : vector<8x2048xf32> to vector<8xf32>
    %27 = vector.shape_cast %26 : vector<8xf32> to vector<8x1xf32>
    %28 = arith.addf %24, %27 : vector<8x1xf32>
    %c0_17 = arith.constant 0 : index
    %c0_18 = arith.constant 0 : index
    %29 = vector.load %arg8[%c0_17, %c0_18] : memref<8x1xf32, #tpu.memory_space<vmem>>, vector<8x1xf32>
    tpu.vector_store %arg8[%c0_17, %c0_18], %28 {strides = array<i32>} : memref<8x1xf32, #tpu.memory_space<vmem>>, vector<8x1xf32>,
    %c0_19 = arith.constant 0 : index
    %c0_20 = arith.constant 0 : index
    %30 = vector.load %arg9[%c0_19, %c0_20] : memref<8x1xf32, #tpu.memory_space<vmem>>, vector<8x1xf32>
    %cst_21 = arith.constant dense<0.000000e+00> : vector<8xf32>
    %31 = vector.multi_reduction <add>, %4, %cst_21 [1] : vector<8x2048xf32> to vector<8xf32>
    %32 = vector.shape_cast %31 : vector<8xf32> to vector<8x1xf32>
    %33 = arith.addf %30, %32 : vector<8x1xf32>
    %c0_22 = arith.constant 0 : index
    %c0_23 = arith.constant 0 : index
    %34 = vector.load %arg9[%c0_22, %c0_23] : memref<8x1xf32, #tpu.memory_space<vmem>>, vector<8x1xf32>
    tpu.vector_store %arg9[%c0_22, %c0_23], %33 {strides = array<i32>} : memref<8x1xf32, #tpu.memory_space<vmem>>, vector<8x1xf32>,
    %c0_24 = arith.constant 0 : index
    %c0_25 = arith.constant 0 : index
    %35 = vector.load %arg10[%c0_24, %c0_25] : memref<8x1xf32, #tpu.memory_space<vmem>>, vector<8x1xf32>
    %cst_26 = arith.constant dense<0.000000e+00> : vector<8xf32>
    %36 = vector.multi_reduction <add>, %10, %cst_26 [1] : vector<8x2048xf32> to vector<8xf32>
    %37 = vector.shape_cast %36 : vector<8xf32> to vector<8x1xf32>
    %38 = arith.addf %35, %37 : vector<8x1xf32>
    %c0_27 = arith.constant 0 : index
    %c0_28 = arith.constant 0 : index
    %39 = vector.load %arg10[%c0_27, %c0_28] : memref<8x1xf32, #tpu.memory_space<vmem>>, vector<8x1xf32>
    tpu.vector_store %arg10[%c0_27, %c0_28], %38 {strides = array<i32>} : memref<8x1xf32, #tpu.memory_space<vmem>>, vector<8x1xf32>,
    %c0_29 = arith.constant 0 : index
    %c0_30 = arith.constant 0 : index
    %40 = vector.load %arg11[%c0_29, %c0_30] : memref<8x1xf32, #tpu.memory_space<vmem>>, vector<8x1xf32>
    %41 = arith.andi %12, %8 : vector<8x2048xi1>
    %42 = arith.extui %41 : vector<8x2048xi1> to vector<8x2048xi32>
    %43 = arith.sitofp %42 : vector<8x2048xi32> to vector<8x2048xf32>
    %cst_31 = arith.constant dense<0.000000e+00> : vector<8xf32>
    %44 = vector.multi_reduction <add>, %43, %cst_31 [1] : vector<8x2048xf32> to vector<8xf32>
    %45 = vector.shape_cast %44 : vector<8xf32> to vector<8x1xf32>
    %46 = arith.addf %40, %45 : vector<8x1xf32>
    %c0_32 = arith.constant 0 : index
    %c0_33 = arith.constant 0 : index
    %47 = vector.load %arg11[%c0_32, %c0_33] : memref<8x1xf32, #tpu.memory_space<vmem>>, vector<8x1xf32>
    tpu.vector_store %arg11[%c0_32, %c0_33], %46 {strides = array<i32>} : memref<8x1xf32, #tpu.memory_space<vmem>>, vector<8x1xf32>,
    %c0_34 = arith.constant 0 : index
    %c0_35 = arith.constant 0 : index
    %48 = vector.load %arg12[%c0_34, %c0_35] : memref<8x1xf32, #tpu.memory_space<vmem>>, vector<8x1xf32>
    %49 = arith.extui %12 : vector<8x2048xi1> to vector<8x2048xi32>
    %50 = arith.sitofp %49 : vector<8x2048xi32> to vector<8x2048xf32>
    %cst_36 = arith.constant dense<0.000000e+00> : vector<8xf32>
    %51 = vector.multi_reduction <add>, %50, %cst_36 [1] : vector<8x2048xf32> to vector<8xf32>
    %52 = vector.shape_cast %51 : vector<8xf32> to vector<8x1xf32>
    %53 = arith.addf %48, %52 : vector<8x1xf32>
    %c0_37 = arith.constant 0 : index
    %c0_38 = arith.constant 0 : index
    %54 = vector.load %arg12[%c0_37, %c0_38] : memref<8x1xf32, #tpu.memory_space<vmem>>, vector<8x1xf32>
    tpu.vector_store %arg12[%c0_37, %c0_38], %53 {strides = array<i32>} : memref<8x1xf32, #tpu.memory_space<vmem>>, vector<8x1xf32>,
    %c1_i32 = arith.constant 1 : i32
    %55 = arith.cmpi eq, %arg1, %c1_i32 : i32
    %56 = arith.extui %55 : i1 to i32
    %c0_i32_39 = arith.constant 0 : i32
    %57 = arith.cmpi ne, %56, %c0_i32_39 : i32
    scf.if %57 {
      %cst_40 = arith.constant 1.000000e+00 : f32
      %cst_41 = arith.constant 8.000000e+00 : f32
      %58 = arith.divf %cst_40, %cst_41 : f32
      %c0_42 = arith.constant 0 : index
      %c0_43 = arith.constant 0 : index
      %c0_44 = arith.constant 0 : index
      %59 = vector.load %arg2[%c0_42, %c0_43, %c0_44] : memref<1x17x8xf32, #tpu.memory_space<vmem>>, vector<1x17x8xf32>
      %60 = vector.shape_cast %59 : vector<1x17x8xf32> to vector<17x8xf32>
      %c0_45 = arith.constant 0 : index
      %c0_46 = arith.constant 0 : index
      %c0_47 = arith.constant 0 : index
      %61 = vector.load %arg3[%c0_45, %c0_46, %c0_47] : memref<1x1x8xi32, #tpu.memory_space<vmem>>, vector<1x1x8xi32>
      %62 = vector.shape_cast %61 : vector<1x1x8xi32> to vector<1x8xi32>
      %cst_48 = arith.constant dense<0xFF800000> : vector<8xf32>
      %63 = vector.multi_reduction <maximumf>, %60, %cst_48 [0] : vector<17x8xf32> to vector<8xf32>
      %64 = vector.shape_cast %63 : vector<8xf32> to vector<1x8xf32>
      %65 = vector.broadcast %64 : vector<1x8xf32> to vector<17x8xf32>
      %66 = arith.subf %60, %65 : vector<17x8xf32>
      %67 = math.exp %66 : vector<17x8xf32>
      %cst_49 = arith.constant dense<0.000000e+00> : vector<8xf32>
      %68 = vector.multi_reduction <add>, %67, %cst_49 [0] : vector<17x8xf32> to vector<8xf32>
      %69 = vector.shape_cast %68 : vector<8xf32> to vector<1x8xf32>
      %70 = math.log %69 : vector<1x8xf32>
      %71 = arith.addf %70, %64 : vector<1x8xf32>
      %72 = tpu.iota {dimensions = array<i32: 0>} : vector<17x8xi32>
      %73 = vector.broadcast %62 : vector<1x8xi32> to vector<17x8xi32>
      %74 = arith.cmpi eq, %72, %73 : vector<17x8xi32>
      %cst_50 = arith.constant 0.000000e+00 : f32
      %75 = vector.broadcast %cst_50 : f32 to vector<17x8xf32>
      %76 = arith.select %74, %60, %75 : vector<17x8xi1>, vector<17x8xf32>
      %cst_51 = arith.constant dense<0.000000e+00> : vector<8xf32>
      %77 = vector.multi_reduction <add>, %76, %cst_51 [0] : vector<17x8xf32> to vector<8xf32>
      %78 = vector.shape_cast %77 : vector<8xf32> to vector<1x8xf32>
      %79 = arith.subf %71, %78 : vector<1x8xf32>
      %80 = vector.shape_cast %79 : vector<1x8xf32> to vector<1x1x8xf32>
      %cst_52 = arith.constant dense<0.000000e+00> : vector<1xf32>
      %81 = vector.multi_reduction <add>, %80, %cst_52 [1, 2] : vector<1x1x8xf32> to vector<1xf32>
      %82 = vector.shape_cast %81 : vector<1xf32> to vector<1x1x1xf32>
      %83 = vector.extract %82[0, 0, 0] : f32 from vector<1x1x1xf32>
      %84 = arith.mulf %83, %58 : f32
      %c0_53 = arith.constant 0 : index
      %c0_54 = arith.constant 0 : index
      %85 = vector.load %arg8[%c0_53, %c0_54] : memref<8x1xf32, #tpu.memory_space<vmem>>, vector<8x1xf32>
      %c0_55 = arith.constant 0 : index
      %c0_56 = arith.constant 0 : index
      %86 = vector.load %arg9[%c0_55, %c0_56] : memref<8x1xf32, #tpu.memory_space<vmem>>, vector<8x1xf32>
      %c0_57 = arith.constant 0 : index
      %c0_58 = arith.constant 0 : index
      %87 = vector.load %arg10[%c0_57, %c0_58] : memref<8x1xf32, #tpu.memory_space<vmem>>, vector<8x1xf32>
      %c0_59 = arith.constant 0 : index
      %c0_60 = arith.constant 0 : index
      %88 = vector.load %arg11[%c0_59, %c0_60] : memref<8x1xf32, #tpu.memory_space<vmem>>, vector<8x1xf32>
      %c0_61 = arith.constant 0 : index
      %c0_62 = arith.constant 0 : index
      %89 = vector.load %arg12[%c0_61, %c0_62] : memref<8x1xf32, #tpu.memory_space<vmem>>, vector<8x1xf32>
      %c0_63 = arith.constant 0 : index
      %c0_64 = arith.constant 0 : index
      %90 = vector.load %arg13[%c0_63, %c0_64] : memref<8x1xf32, #tpu.memory_space<vmem>>, vector<8x1xf32>
      %91 = vector.shape_cast %90 : vector<8x1xf32> to vector<1x8x1xf32>
      %cst_65 = arith.constant dense<0.000000e+00> : vector<1xf32>
      %92 = vector.multi_reduction <add>, %91, %cst_65 [1, 2] : vector<1x8x1xf32> to vector<1xf32>
      %93 = vector.shape_cast %92 : vector<1xf32> to vector<1x1x1xf32>
      %94 = vector.extract %93[0, 0, 0] : f32 from vector<1x1x1xf32>
      %cst_66 = arith.constant 0.000000e+00 : f32
      %95 = arith.subf %cst_66, %94 : f32
      %cst_67 = arith.constant 8.000000e+00 : f32
      %cst_68 = arith.constant 4.096000e+03 : f32
      %96 = arith.mulf %cst_67, %cst_68 : f32
      %97 = arith.divf %95, %96 : f32
      %cst_69 = arith.constant 2.000000e+00 : f32
      %98 = vector.broadcast %cst_69 : f32 to vector<8x1xf32>
      %99 = arith.mulf %98, %85 : vector<8x1xf32>
      %cst_70 = arith.constant 1.000000e+00 : f32
      %100 = vector.broadcast %cst_70 : f32 to vector<8x1xf32>
      %101 = arith.addf %99, %100 : vector<8x1xf32>
      %102 = arith.addf %86, %87 : vector<8x1xf32>
      %cst_71 = arith.constant 1.000000e+00 : f32
      %103 = vector.broadcast %cst_71 : f32 to vector<8x1xf32>
      %104 = arith.addf %102, %103 : vector<8x1xf32>
      %105 = arith.divf %101, %104 : vector<8x1xf32>
      %cst_72 = arith.constant 1.000000e+00 : f32
      %106 = vector.broadcast %cst_72 : f32 to vector<8x1xf32>
      %107 = arith.subf %106, %105 : vector<8x1xf32>
      %108 = vector.shape_cast %107 : vector<8x1xf32> to vector<1x8x1xf32>
      %cst_73 = arith.constant dense<0.000000e+00> : vector<1xf32>
      %109 = vector.multi_reduction <add>, %108, %cst_73 [1, 2] : vector<1x8x1xf32> to vector<1xf32>
      %110 = vector.shape_cast %109 : vector<1xf32> to vector<1x1x1xf32>
      %111 = vector.extract %110[0, 0, 0] : f32 from vector<1x1x1xf32>
      %112 = arith.mulf %111, %58 : f32
      %113 = arith.addf %97, %112 : f32
      %114 = arith.addf %87, %89 : vector<8x1xf32>
      %115 = arith.subf %114, %88 : vector<8x1xf32>
      %cst_74 = arith.constant 9.99999997E-7 : f32
      %116 = vector.broadcast %cst_74 : f32 to vector<8x1xf32>
      %117 = arith.addf %115, %116 : vector<8x1xf32>
      %118 = arith.divf %88, %117 : vector<8x1xf32>
      %cst_75 = arith.constant 5.000000e-01 : f32
      %119 = vector.broadcast %cst_75 : f32 to vector<8x1xf32>
      %120 = arith.cmpf ogt, %118, %119 : vector<8x1xf32>
      %121 = arith.extui %120 : vector<8x1xi1> to vector<8x1xi32>
      %122 = arith.sitofp %121 : vector<8x1xi32> to vector<8x1xf32>
      %c0_76 = arith.constant 0 : index
      %c0_77 = arith.constant 0 : index
      %c0_78 = arith.constant 0 : index
      %123 = vector.load %arg6[%c0_76, %c0_77, %c0_78] : memref<1x8x1xf32, #tpu.memory_space<vmem>>, vector<1x8x1xf32>
      %124 = vector.shape_cast %123 : vector<1x8x1xf32> to vector<8x1xf32>
      %125 = arith.subf %124, %118 : vector<8x1xf32>
      %126 = arith.mulf %125, %125 : vector<8x1xf32>
      %127 = vector.shape_cast %122 : vector<8x1xf32> to vector<1x8x1xf32>
      %cst_79 = arith.constant dense<0.000000e+00> : vector<1xf32>
      %128 = vector.multi_reduction <add>, %127, %cst_79 [1, 2] : vector<1x8x1xf32> to vector<1xf32>
      %129 = vector.shape_cast %128 : vector<1xf32> to vector<1x1x1xf32>
      %130 = vector.extract %129[0, 0, 0] : f32 from vector<1x1x1xf32>
      %cst_80 = arith.constant 0.000000e+00 : f32
      %131 = arith.cmpf ogt, %130, %cst_80 : f32
      %132 = arith.mulf %122, %126 : vector<8x1xf32>
      %133 = vector.shape_cast %132 : vector<8x1xf32> to vector<1x8x1xf32>
      %cst_81 = arith.constant dense<0.000000e+00> : vector<1xf32>
      %134 = vector.multi_reduction <add>, %133, %cst_81 [1, 2] : vector<1x8x1xf32> to vector<1xf32>
      %135 = vector.shape_cast %134 : vector<1xf32> to vector<1x1x1xf32>
      %136 = vector.extract %135[0, 0, 0] : f32 from vector<1x1x1xf32>
      %cst_82 = arith.constant 1.000000e+00 : f32
      %137 = arith.maximumf %130, %cst_82 : f32
      %138 = arith.divf %136, %137 : f32
      %cst_83 = arith.constant 0.000000e+00 : f32
      %139 = arith.select %131, %138, %cst_83 : f32
      %cst_84 = arith.constant 1.000000e+01 : f32
      %140 = arith.mulf %cst_84, %113 : f32
      %141 = arith.addf %84, %140 : f32
      %cst_85 = arith.constant 1.000000e+01 : f32
      %142 = arith.mulf %cst_85, %139 : f32
      %143 = arith.addf %141, %142 : f32
      %144 = tpu.iota {dimensions = array<i32: 0>} : vector<8x128xi32>
      %145 = tpu.iota {dimensions = array<i32: 1>} : vector<8x128xi32>
      %c0_i32_86 = arith.constant 0 : i32
      %146 = vector.broadcast %c0_i32_86 : i32 to vector<8x128xi32>
      %147 = arith.cmpi eq, %144, %146 : vector<8x128xi32>
      %c0_i32_87 = arith.constant 0 : i32
      %148 = vector.broadcast %c0_i32_87 : i32 to vector<8x128xi32>
      %149 = arith.cmpi eq, %145, %148 : vector<8x128xi32>
      %150 = arith.andi %147, %149 : vector<8x128xi1>
      %cst_88 = arith.constant 0.000000e+00 : f32
      %151 = vector.broadcast %143 : f32 to vector<8x128xf32>
      %152 = vector.broadcast %cst_88 : f32 to vector<8x128xf32>
      %153 = arith.select %150, %151, %152 : vector<8x128xi1>, vector<8x128xf32>
      %c1_i32_89 = arith.constant 1 : i32
      %154 = vector.broadcast %c1_i32_89 : i32 to vector<8x128xi32>
      %155 = arith.cmpi eq, %145, %154 : vector<8x128xi32>
      %156 = arith.andi %147, %155 : vector<8x128xi1>
      %157 = vector.broadcast %84 : f32 to vector<8x128xf32>
      %158 = arith.select %156, %157, %153 : vector<8x128xi1>, vector<8x128xf32>
      %c2_i32 = arith.constant 2 : i32
      %159 = vector.broadcast %c2_i32 : i32 to vector<8x128xi32>
      %160 = arith.cmpi eq, %145, %159 : vector<8x128xi32>
      %161 = arith.andi %147, %160 : vector<8x128xi1>
      %162 = vector.broadcast %113 : f32 to vector<8x128xf32>
      %163 = arith.select %161, %162, %158 : vector<8x128xi1>, vector<8x128xf32>
      %c3_i32 = arith.constant 3 : i32
      %164 = vector.broadcast %c3_i32 : i32 to vector<8x128xi32>
      %165 = arith.cmpi eq, %145, %164 : vector<8x128xi32>
      %166 = arith.andi %147, %165 : vector<8x128xi1>
      %167 = vector.broadcast %139 : f32 to vector<8x128xf32>
      %168 = arith.select %166, %167, %163 : vector<8x128xi1>, vector<8x128xf32>
      %c0_90 = arith.constant 0 : index
      %c0_91 = arith.constant 0 : index
      %c0_92 = arith.constant 0 : index
      %169 = vector.load %arg7[%c0_90, %c0_91, %c0_92] : memref<1x8x128xf32, #tpu.memory_space<vmem>>, vector<1x8x128xf32>
      %170 = vector.shape_cast %169 : vector<1x8x128xf32> to vector<8x128xf32>
      %171 = vector.shape_cast %168 : vector<8x128xf32> to vector<1x8x128xf32>
      tpu.vector_store %arg7[%c0_90, %c0_91, %c0_92], %171 {strides = array<i32>} : memref<1x8x128xf32, #tpu.memory_space<vmem>>, vector<1x8x128xf32>,
    } else {
    }
    return
  }
  func.func @transform_0(%arg0: i32, %arg1: i32) -> (i32, i32, i32) {
    %c0_i32 = arith.constant 0 : i32
    %c0_i32_0 = arith.constant 0 : i32
    %c0_i32_1 = arith.constant 0 : i32
    return %arg0, %c0_i32, %c0_i32_0 : i32, i32, i32
  }
  func.func @transform_1(%arg0: i32, %arg1: i32) -> (i32, i32, i32) {
    %c0_i32 = arith.constant 0 : i32
    %c0_i32_0 = arith.constant 0 : i32
    %c0_i32_1 = arith.constant 0 : i32
    return %arg0, %c0_i32, %c0_i32_0 : i32, i32, i32
  }
  func.func @transform_2(%arg0: i32, %arg1: i32) -> (i32, i32, i32) {
    %c0_i32 = arith.constant 0 : i32
    %c0_i32_0 = arith.constant 0 : i32
    return %arg0, %c0_i32, %arg1 : i32, i32, i32
  }
  func.func @transform_3(%arg0: i32, %arg1: i32) -> (i32, i32, i32) {
    %c0_i32 = arith.constant 0 : i32
    %c0_i32_0 = arith.constant 0 : i32
    return %arg0, %c0_i32, %arg1 : i32, i32, i32
  }
  func.func @transform_4(%arg0: i32, %arg1: i32) -> (i32, i32, i32) {
    %c0_i32 = arith.constant 0 : i32
    %c0_i32_0 = arith.constant 0 : i32
    %c0_i32_1 = arith.constant 0 : i32
    return %arg0, %c0_i32, %c0_i32_0 : i32, i32, i32
  }
  func.func @transform_5(%arg0: i32, %arg1: i32) -> (i32, i32, i32) {
    %c0_i32 = arith.constant 0 : i32
    %c0_i32_0 = arith.constant 0 : i32
    %c0_i32_1 = arith.constant 0 : i32
    return %arg0, %c0_i32, %c0_i32_0 : i32, i32, i32
  }
}

</mosaic_0001>

<llo_original>
// kernel: cp_loss_forward.1
$region0: #{cp_loss_forward.1}
  #allocation0 [shape = 'u32[]', space=smem, size = 0x4, offset = 0x4, fixed_abs, tag = 'smem constant byte address 0x4 - core index']
  #allocation1 [shape = 'u32[72,128]{1,0:T(1,128)}', space=vmem, size = 0x9000, scoped, tag = 'internal scratch']
  #allocation2 [shape = 'f32[8,1]{1,0:T(8,128)}', space=vmem, size = 0x1000, scoped, tag = 'scratch operand']
  #allocation3 [shape = 'f32[8,1]{1,0:T(8,128)}', space=vmem, size = 0x1000, scoped, tag = 'scratch operand']
  #allocation4 [shape = 'f32[8,1]{1,0:T(8,128)}', space=vmem, size = 0x1000, scoped, tag = 'scratch operand']
  #allocation5 [shape = 'f32[8,1]{1,0:T(8,128)}', space=vmem, size = 0x1000, scoped, tag = 'scratch operand']
  #allocation6 [shape = 'f32[8,1]{1,0:T(8,128)}', space=vmem, size = 0x1000, scoped, tag = 'scratch operand']
  #allocation7 [shape = 'f32[8,1]{1,0:T(8,128)}', space=vmem, size = 0x1000, scoped, tag = 'scratch operand']
  %s0 = inlined_call_operand.vmem [shape: f32[2,17,8], index: 0, kind: input, shape index: {}]
  %s1 = inlined_call_operand.vmem [shape: s32[2,1,8], index: 1, kind: input, shape index: {}]
  %s2 = inlined_call_operand.vmem [shape: f32[2,8,4096], index: 2, kind: input, shape index: {}]
  %s3 = inlined_call_operand.vmem [shape: bf16[2,8,4096], index: 3, kind: input, shape index: {}]
  %s4 = inlined_call_operand.vmem [shape: f32[2,8,1], index: 4, kind: input, shape index: {}]
  %s5 = inlined_call_operand.vmem [shape: f32[2,8,128], index: 5, kind: output, shape index: {}]
  %s6 = sld [smem:[#allocation0]]
  $region61: #{cp_loss_forward.1} parent=0
    _
  %s8 = ssub.s32 1, %s6
  %s9 = scalar_select 0, %s8, %s6
  loop: start=0, step=1, limit=6
  $region2: #{cp_loss_forward.1} parent=0 // loop_pre_header
    _
  $region3: #{cp_loss_forward.1} parent=0 // loop_header
    %s11 = sphi 0, %s15
    %p12 = scmp.ge.s32.totalorder %s11, 6
    %s18 = sphi 0, %s30
    %s19 = sphi 0, %s26
    %s20 = sphi 0, %s18
    %s21 = sphi 0, %s19
    %s22 = sphi 0, %s20
    %s23 = sphi 0, %s21
    %s33 = sphi 0, %s35
    %s36 = sphi 0, %s33
    %s37 = sphi 0, %s36
    %s53 = sphi 0, %s37
    %s59 = sphi 0, %s61
    %s62 = sphi 0, %s59
    %s63 = sphi 0, %s62
    %s79 = sphi 0, %s63
    %s87 = sphi 0, %s89
    %s90 = sphi 0, %s87
    %s91 = sphi 0, %s90
    %s107 = sphi 0, %s91
    %s115 = sphi 0, %s117
    %s118 = sphi 0, %s115
    %s119 = sphi 0, %s118
    %s135 = sphi 0, %s119
    %s141 = sphi 0, %s143
    %s144 = sphi 0, %s141
    %s145 = sphi 0, %s144
    %s161 = sphi 0, %s145
    %s167 = sphi 0, %s169
    %s170 = sphi 0, %s167
    %s171 = sphi 0, %s170
    %s187 = sphi 0, %s171
  $region4: #{cp_loss_forward.1} parent=0 // loop_header_branch
    %14 = sbr.rel (%p12) target = $region8
  $region5: #{cp_loss_forward.1} parent=0 // loop_body
    %s16 = ssub.s32 %s11, 1
    %s17 = ssub.s32 %s11, 2
    %s24 = sadd.s32 1, %s19
    %p25 = scmp.ge.s32.totalorder %s24, 2
    %s26 = scalar_select %p25, 0, %s24
    %s27 = sadd.s32 1, %s18
    %s28 = scalar_select %p25, %s27, %s18
    %p29 = scmp.ge.s32.totalorder %s28, 2
    %s30 = scalar_select %p29, 0, %s28
    %s31 = ssub.s32 %s18, %s30
    %p32 = scmp.eq.s32.totalorder %s31, 0
    %s34 = sadd.s32 %s33, 1
    %s35 = scalar_select %p32, %s33, %s34
    %p38 = pneg %p32
    %p39 = scmp.eq.s32.totalorder %s11, 3
    %p40 = por %p38, %p39
    %p41 = scmp.ne.s32.totalorder %s33, %s36
    %p42 = scmp.eq.s32.totalorder %s11, 0
    %p43 = por %p41, %p42
    %p44 = scmp.ne.s32.totalorder %s33, %s36
    %p45 = scmp.eq.s32.totalorder %s16, 3
    %p46 = por %p44, %p45
    %p47 = scmp.ne.s32.totalorder %s36, %s37
    %p48 = scmp.eq.s32.totalorder %s16, 0
    %p49 = por %p47, %p48
    %p50 = scmp.ne.s32.totalorder %s36, %s37
    %p51 = scmp.eq.s32.totalorder %s17, 3
    %p52 = por %p50, %p51
    %p54 = scmp.ne.s32.totalorder %s37, %s53
    %p55 = scmp.eq.s32.totalorder %s17, 0
    %p56 = por %p54, %p55
    %s57 = ssub.s32 %s18, %s30
    %p58 = scmp.eq.s32.totalorder %s57, 0
    %s60 = sadd.s32 %s59, 1
    %s61 = scalar_select %p58, %s59, %s60
    %p64 = pneg %p58
    %p65 = scmp.eq.s32.totalorder %s11, 3
    %p66 = por %p64, %p65
    %p67 = scmp.ne.s32.totalorder %s59, %s62
    %p68 = scmp.eq.s32.totalorder %s11, 0
    %p69 = por %p67, %p68
    %p70 = scmp.ne.s32.totalorder %s59, %s62
    %p71 = scmp.eq.s32.totalorder %s16, 3
    %p72 = por %p70, %p71
    %p73 = scmp.ne.s32.totalorder %s62, %s63
    %p74 = scmp.eq.s32.totalorder %s16, 0
    %p75 = por %p73, %p74
    %p76 = scmp.ne.s32.totalorder %s62, %s63
    %p77 = scmp.eq.s32.totalorder %s17, 3
    %p78 = por %p76, %p77
    %p80 = scmp.ne.s32.totalorder %s63, %s79
    %p81 = scmp.eq.s32.totalorder %s17, 0
    %p82 = por %p80, %p81
    %s83 = ssub.s32 %s18, %s30
    %s84 = ssub.s32 %s19, %s26
    %s85 = sor.u32 %s83, %s84
    %p86 = scmp.eq.s32.totalorder %s85, 0
    %s88 = sadd.s32 %s87, 1
    %s89 = scalar_select %p86, %s87, %s88
    %p92 = pneg %p86
    %p93 = scmp.eq.s32.totalorder %s11, 3
    %p94 = por %p92, %p93
    %p95 = scmp.ne.s32.totalorder %s87, %s90
    %p96 = scmp.eq.s32.totalorder %s11, 0
    %p97 = por %p95, %p96
    %p98 = scmp.ne.s32.totalorder %s87, %s90
    %p99 = scmp.eq.s32.totalorder %s16, 3
    %p100 = por %p98, %p99
    %p101 = scmp.ne.s32.totalorder %s90, %s91
    %p102 = scmp.eq.s32.totalorder %s16, 0
    %p103 = por %p101, %p102
    %p104 = scmp.ne.s32.totalorder %s90, %s91
    %p105 = scmp.eq.s32.totalorder %s17, 3
    %p106 = por %p104, %p105
    %p108 = scmp.ne.s32.totalorder %s91, %s107
    %p109 = scmp.eq.s32.totalorder %s17, 0
    %p110 = por %p108, %p109
    %s111 = ssub.s32 %s18, %s30
    %s112 = ssub.s32 %s19, %s26
    %s113 = sor.u32 %s111, %s112
    %p114 = scmp.eq.s32.totalorder %s113, 0
    %s116 = sadd.s32 %s115, 1
    %s117 = scalar_select %p114, %s115, %s116
    %p120 = pneg %p114
    %p121 = scmp.eq.s32.totalorder %s11, 3
    %p122 = por %p120, %p121
    %p123 = scmp.ne.s32.totalorder %s115, %s118
    %p124 = scmp.eq.s32.totalorder %s11, 0
    %p125 = por %p123, %p124
    %p126 = scmp.ne.s32.totalorder %s115, %s118
    %p127 = scmp.eq.s32.totalorder %s16, 3
    %p128 = por %p126, %p127
    %p129 = scmp.ne.s32.totalorder %s118, %s119
    %p130 = scmp.eq.s32.totalorder %s16, 0
    %p131 = por %p129, %p130
    %p132 = scmp.ne.s32.totalorder %s118, %s119
    %p133 = scmp.eq.s32.totalorder %s17, 3
    %p134 = por %p132, %p133
    %p136 = scmp.ne.s32.totalorder %s119, %s135
    %p137 = scmp.eq.s32.totalorder %s17, 0
    %p138 = por %p136, %p137
    %s139 = ssub.s32 %s18, %s30
    %p140 = scmp.eq.s32.totalorder %s139, 0
    %s142 = sadd.s32 %s141, 1
    %s143 = scalar_select %p140, %s141, %s142
    %p146 = pneg %p140
    %p147 = scmp.eq.s32.totalorder %s11, 3
    %p148 = por %p146, %p147
    %p149 = scmp.ne.s32.totalorder %s141, %s144
    %p150 = scmp.eq.s32.totalorder %s11, 0
    %p151 = por %p149, %p150
    %p152 = scmp.ne.s32.totalorder %s141, %s144
    %p153 = scmp.eq.s32.totalorder %s16, 3
    %p154 = por %p152, %p153
    %p155 = scmp.ne.s32.totalorder %s144, %s145
    %p156 = scmp.eq.s32.totalorder %s16, 0
    %p157 = por %p155, %p156
    %p158 = scmp.ne.s32.totalorder %s144, %s145
    %p159 = scmp.eq.s32.totalorder %s17, 3
    %p160 = por %p158, %p159
    %p162 = scmp.ne.s32.totalorder %s145, %s161
    %p163 = scmp.eq.s32.totalorder %s17, 0
    %p164 = por %p162, %p163
    %s165 = ssub.s32 %s18, %s30
    %p166 = scmp.eq.s32.totalorder %s165, 0
    %s168 = sadd.s32 %s167, 1
    %s169 = scalar_select %p166, %s167, %s168
    %p172 = pneg %p166
    %p173 = scmp.eq.s32.totalorder %s11, 3
    %p174 = por %p172, %p173
    %p175 = scmp.ne.s32.totalorder %s167, %s170
    %p176 = scmp.eq.s32.totalorder %s11, 0
    %p177 = por %p175, %p176
    %p178 = scmp.ne.s32.totalorder %s167, %s170
    %p179 = scmp.eq.s32.totalorder %s16, 3
    %p180 = por %p178, %p179
    %p181 = scmp.ne.s32.totalorder %s170, %s171
    %p182 = scmp.eq.s32.totalorder %s16, 0
    %p183 = por %p181, %p182
    %p184 = scmp.ne.s32.totalorder %s170, %s171
    %p185 = scmp.eq.s32.totalorder %s17, 3
    %p186 = por %p184, %p185
    %p188 = scmp.ne.s32.totalorder %s171, %s187
    %p189 = scmp.eq.s32.totalorder %s17, 0
    %p190 = por %p188, %p189
    %p191 = scmp.le.s32.totalorder 1, %s11
    %p192 = scmp.lt.s32.totalorder %s11, 5
    %p193 = pnand %p191, %p192
    %p194 = pneg %p193
    // Predicated region
    $region9: #{cp_loss_forward.1} parent=5 // pred_check
      _
    $region10: #{cp_loss_forward.1} parent=5 // pred_check_branch
      %196 = sbr.rel (%p193) target = $region12
    $region11: #{cp_loss_forward.1} parent=5 // pred_region
      %s197 = ssub.s32 %s11, 1
    $region12: #{cp_loss_forward.1} parent=5 // pred_fallthru
      _
    %p198 = scmp.lt.s32.totalorder %s11, 4
    // Predicated region
    $region13: #{cp_loss_forward.1} parent=5 // pred_check
      %p199 = pneg %p198
    $region14: #{cp_loss_forward.1} parent=5 // pred_check_branch
      %201 = sbr.rel (%p199) target = $region16
    $region15: #{cp_loss_forward.1} parent=5 // pred_region
      // Predicated region
      $region17: #{cp_loss_forward.1} parent=15 // pred_check
        %p202 = pneg %p43
      $region18: #{cp_loss_forward.1} parent=15 // pred_check_branch
        %204 = sbr.rel (%p202) target = $region20
      $region19: #{cp_loss_forward.1} parent=15 // pred_region
        %p205 = scmp.lt.s32.totalorder %s18, 1
        %s206 = scalar_select %p205, %s18, 1
        %s207 = smul.addr %s206, 3
        %s208 = smul.addr %s207, 8
        %s209 = scalar_lea.vmem %s0, %s208
      $region20: #{cp_loss_forward.1} parent=15 // pred_fallthru
        _
      // Predicated region
      $region21: #{cp_loss_forward.1} parent=15 // pred_check
        %p210 = pneg %p69
      $region22: #{cp_loss_forward.1} parent=15 // pred_check_branch
        %212 = sbr.rel (%p210) target = $region24
      $region23: #{cp_loss_forward.1} parent=15 // pred_region
        %p213 = scmp.lt.s32.totalorder %s18, 1
        %s214 = scalar_select %p213, %s18, 1
        %s215 = scalar_lea.vmem %s1, %s214
      $region24: #{cp_loss_forward.1} parent=15 // pred_fallthru
        _
      // Predicated region
      $region25: #{cp_loss_forward.1} parent=15 // pred_check
        %p216 = pneg %p97
      $region26: #{cp_loss_forward.1} parent=15 // pred_check_branch
        %218 = sbr.rel (%p216) target = $region28
      $region27: #{cp_loss_forward.1} parent=15 // pred_region
        %s219 = smul.u32 16, %s19
        %p220 = scmp.lt.s32.totalorder %s18, 1
        %s221 = scalar_select %p220, %s18, 1
        %p222 = scmp.lt.s32.totalorder %s219, 31
        %s223 = scalar_select %p222, %s219, 31
        %s224 = smul.addr %s221, 32
        %s225 = sadd.s32 %s223, %s224
        %s226 = smul.addr %s225, 8
        %s227 = scalar_lea.vmem %s2, %s226
        %s228 = smul.u32 16, %s19
      $region28: #{cp_loss_forward.1} parent=15 // pred_fallthru
        _
      // Predicated region
      $region29: #{cp_loss_forward.1} parent=15 // pred_check
        %p229 = pneg %p125
      $region30: #{cp_loss_forward.1} parent=15 // pred_check_branch
        %231 = sbr.rel (%p229) target = $region32
      $region31: #{cp_loss_forward.1} parent=15 // pred_region
        %s232 = smul.u32 16, %s19
        %p233 = scmp.lt.s32.totalorder %s18, 1
        %s234 = scalar_select %p233, %s18, 1
        %p235 = scmp.lt.s32.totalorder %s232, 31
        %s236 = scalar_select %p235, %s232, 31
        %s237 = smul.addr %s234, 32
        %s238 = sadd.s32 %s236, %s237
        %s239 = smul.addr %s238, 4
        %s240 = scalar_lea.vmem %s3, %s239
        %s241 = smul.u32 16, %s19
      $region32: #{cp_loss_forward.1} parent=15 // pred_fallthru
        _
      // Predicated region
      $region33: #{cp_loss_forward.1} parent=15 // pred_check
        %p242 = pneg %p151
      $region34: #{cp_loss_forward.1} parent=15 // pred_check_branch
        %244 = sbr.rel (%p242) target = $region36
      $region35: #{cp_loss_forward.1} parent=15 // pred_region
        %p245 = scmp.lt.s32.totalorder %s18, 1
        %s246 = scalar_select %p245, %s18, 1
        %s247 = smul.addr %s246, 8
        %s248 = scalar_lea.vmem %s4, %s247
      $region36: #{cp_loss_forward.1} parent=15 // pred_fallthru
        _
    $region16: #{cp_loss_forward.1} parent=5 // pred_fallthru
      _
    %p249 = scmp.le.s32.totalorder 1, %s11
    %p250 = scmp.lt.s32.totalorder %s11, 5
    %p251 = pnand %p249, %p250
    %p252 = pneg %p251
    // Predicated region
    $region37: #{cp_loss_forward.1} parent=5 // pred_check
      _
    $region38: #{cp_loss_forward.1} parent=5 // pred_check_branch
      %254 = sbr.rel (%p251) target = $region40
    $region39: #{cp_loss_forward.1} parent=5 // pred_region
      %s255 = ssub.s32 %s11, 1
      %p256 = scmp.lt.s32.totalorder %s20, 1
      %s257 = scalar_select %p256, %s20, 1
      %s258 = smul.addr %s257, 3
      %s259 = smul.addr %s258, 8
      %s260 = scalar_lea.vmem %s0, %s259
      %p261 = pneg %p49
      %p262 = pneg %p46
      %p263 = scmp.lt.s32.totalorder %s20, 1
      %s264 = scalar_select %p263, %s20, 1
      %s265 = scalar_lea.vmem %s1, %s264
      %p266 = pneg %p75
      %p267 = pneg %p72
      %s268 = smul.u32 16, %s21
      %p269 = scmp.lt.s32.totalorder %s20, 1
      %s270 = scalar_select %p269, %s20, 1
      %p271 = scmp.lt.s32.totalorder %s268, 31
      %s272 = scalar_select %p271, %s268, 31
      %s273 = smul.addr %s270, 32
      %s274 = sadd.s32 %s272, %s273
      %s275 = smul.addr %s274, 8
      %s276 = scalar_lea.vmem %s2, %s275
      %p277 = pneg %p103
      %p278 = pneg %p100
      %s279 = smul.u32 16, %s21
      %p280 = scmp.lt.s32.totalorder %s20, 1
      %s281 = scalar_select %p280, %s20, 1
      %p282 = scmp.lt.s32.totalorder %s279, 31
      %s283 = scalar_select %p282, %s279, 31
      %s284 = smul.addr %s281, 32
      %s285 = sadd.s32 %s283, %s284
      %s286 = smul.addr %s285, 4
      %s287 = scalar_lea.vmem %s3, %s286
      %p288 = pneg %p131
      %p289 = pneg %p128
      %p290 = scmp.lt.s32.totalorder %s20, 1
      %s291 = scalar_select %p290, %s20, 1
      %s292 = smul.addr %s291, 8
      %s293 = scalar_lea.vmem %s4, %s292
      %p294 = pneg %p157
      %p295 = pneg %p154
      %p296 = pneg %p183
      %p297 = pneg %p180
      %p298 = scmp.lt.s32.totalorder %s20, 1
      %s299 = scalar_select %p298, %s20, 1
      %s300 = smul.addr %s299, 8
      %s301 = scalar_lea.vmem %s5, %s300
      %p302 = scmp.lt.s32.totalorder %s20, 1
      %s303 = scalar_select %p302, %s20, 1
      %s304 = smul.addr %s303, 3
      %s305 = smul.addr %s304, 8
      %s306 = scalar_lea.vmem %s0, %s305
      %p307 = scmp.lt.s32.totalorder %s20, 1
      %s308 = scalar_select %p307, %s20, 1
      %s309 = scalar_lea.vmem %s1, %s308
      %s310 = smul.u32 16, %s21
      %p311 = scmp.lt.s32.totalorder %s20, 1
      %s312 = scalar_select %p311, %s20, 1
      %p313 = scmp.lt.s32.totalorder %s310, 31
      %s314 = scalar_select %p313, %s310, 31
      %s315 = smul.addr %s312, 32
      %s316 = sadd.s32 %s314, %s315
      %s317 = smul.addr %s316, 8
      %s318 = scalar_lea.vmem %s2, %s317
      %s319 = smul.u32 16, %s21
      %s320 = smul.u32 16, %s21
      %p321 = scmp.lt.s32.totalorder %s20, 1
      %s322 = scalar_select %p321, %s20, 1
      %p323 = scmp.lt.s32.totalorder %s320, 31
      %s324 = scalar_select %p323, %s320, 31
      %s325 = smul.addr %s322, 32
      %s326 = sadd.s32 %s324, %s325
      %s327 = smul.addr %s326, 4
      %s328 = scalar_lea.vmem %s3, %s327
      %s329 = smul.u32 16, %s21
      %p330 = scmp.lt.s32.totalorder %s20, 1
      %s331 = scalar_select %p330, %s20, 1
      %s332 = smul.addr %s331, 8
      %s333 = scalar_lea.vmem %s4, %s332
      %p334 = scmp.lt.s32.totalorder %s20, 1
      %s335 = scalar_select %p334, %s20, 1
      %s336 = smul.addr %s335, 8
      %s337 = scalar_lea.vmem %s5, %s336
      %p338 = scmp.eq.s32.totalorder %s21, 0
      // Predicated region
      $region41: #{cp_loss_forward.1} parent=39 // pred_check
        %p339 = pneg %p338
      $region42: #{cp_loss_forward.1} parent=39 // pred_check_branch
        %341 = sbr.rel (%p339) target = $region44
      $region43: #{cp_loss_forward.1} parent=39 // pred_region
        %vm342 = vcmask 7168
        %343 = vst.msk [vmem:[#allocation2] sm:$0xff] %vm342, 0.0
        %344 = vst.msk [vmem:[#allocation3] sm:$0xff] %vm342, 0.0
        %345 = vst.msk [vmem:[#allocation4] sm:$0xff] %vm342, 0.0
        %346 = vst.msk [vmem:[#allocation5] sm:$0xff] %vm342, 0.0
        %347 = vst.msk [vmem:[#allocation6] sm:$0xff] %vm342, 0.0
        %348 = vst.msk [vmem:[#allocation7] sm:$0xff] %vm342, 0.0
      $region44: #{cp_loss_forward.1} parent=39 // pred_fallthru
        _
      %v349 = vld [vmem:[%s318] sm:$0xff]
      %v350 = vld [vmem:[%s318 + $0x8] sm:$0xff]
      %v351 = vld [vmem:[%s318 + $0x10] sm:$0xff]
      %v352 = vld [vmem:[%s318 + $0x18] sm:$0xff]
      %v353 = vld [vmem:[%s318 + $0x20] sm:$0xff]
      %v354 = vld [vmem:[%s318 + $0x28] sm:$0xff]
      %v355 = vld [vmem:[%s318 + $0x30] sm:$0xff]
      %v356 = vld [vmem:[%s318 + $0x38] sm:$0xff]
      %v357 = vld [vmem:[%s318 + $0x40] sm:$0xff]
      %v358 = vld [vmem:[%s318 + $0x48] sm:$0xff]
      %v359 = vld [vmem:[%s318 + $0x50] sm:$0xff]
      %v360 = vld [vmem:[%s318 + $0x58] sm:$0xff]
      %v361 = vld [vmem:[%s318 + $0x60] sm:$0xff]
      %v362 = vld [vmem:[%s318 + $0x68] sm:$0xff]
      %v363 = vld [vmem:[%s318 + $0x70] sm:$0xff]
      %v364 = vld [vmem:[%s318 + $0x78] sm:$0xff]
      %v365 = vld [vmem:[%s328] sm:$0xff]
      %v366 = vld [vmem:[%s328 + $0x8] sm:$0xff]
      %v367 = vld [vmem:[%s328 + $0x10] sm:$0xff]
      %v368 = vld [vmem:[%s328 + $0x18] sm:$0xff]
      %v369 = vld [vmem:[%s328 + $0x20] sm:$0xff]
      %v370 = vld [vmem:[%s328 + $0x28] sm:$0xff]
      %v371 = vld [vmem:[%s328 + $0x30] sm:$0xff]
      %v372 = vld [vmem:[%s328 + $0x38] sm:$0xff]
      %v373 = vunpack.c.l.bf16 %v365
      %v374 = vunpack.c.h.bf16 %v365
      %v375 = vunpack.c.l.bf16 %v366
      %v376 = vunpack.c.h.bf16 %v366
      %v377 = vunpack.c.l.bf16 %v367
      %v378 = vunpack.c.h.bf16 %v367
      %v379 = vunpack.c.l.bf16 %v368
      %v380 = vunpack.c.h.bf16 %v368
      %v381 = vunpack.c.l.bf16 %v369
      %v382 = vunpack.c.h.bf16 %v369
      %v383 = vunpack.c.l.bf16 %v370
      %v384 = vunpack.c.h.bf16 %v370
      %v385 = vunpack.c.l.bf16 %v371
      %v386 = vunpack.c.h.bf16 %v371
      %v387 = vunpack.c.l.bf16 %v372
      %v388 = vunpack.c.h.bf16 %v372
      %vm389 = vcmp.gt.f32.partialorder %v373, 0.5
      %vm390 = vcmp.gt.f32.partialorder %v374, 0.5
      %vm391 = vcmp.gt.f32.partialorder %v375, 0.5
      %vm392 = vcmp.gt.f32.partialorder %v376, 0.5
      %vm393 = vcmp.gt.f32.partialorder %v377, 0.5
      %vm394 = vcmp.gt.f32.partialorder %v378, 0.5
      %vm395 = vcmp.gt.f32.partialorder %v379, 0.5
      %vm396 = vcmp.gt.f32.partialorder %v380, 0.5
      %vm397 = vcmp.gt.f32.partialorder %v381, 0.5
      %vm398 = vcmp.gt.f32.partialorder %v382, 0.5
      %vm399 = vcmp.gt.f32.partialorder %v383, 0.5
      %vm400 = vcmp.gt.f32.partialorder %v384, 0.5
      %vm401 = vcmp.gt.f32.partialorder %v385, 0.5
      %vm402 = vcmp.gt.f32.partialorder %v386, 0.5
      %vm403 = vcmp.gt.f32.partialorder %v387, 0.5
      %vm404 = vcmp.gt.f32.partialorder %v388, 0.5
      %v405 = vsel %vm389, 1, 0
      %v406 = vsel %vm390, 1, 0
      %v407 = vsel %vm391, 1, 0
      %v408 = vsel %vm392, 1, 0
      %v409 = vsel %vm393, 1, 0
      %v410 = vsel %vm394, 1, 0
      %v411 = vsel %vm395, 1, 0
      %v412 = vsel %vm396, 1, 0
      %v413 = vsel %vm397, 1, 0
      %v414 = vsel %vm398, 1, 0
      %v415 = vsel %vm399, 1, 0
      %v416 = vsel %vm400, 1, 0
      %v417 = vsel %vm401, 1, 0
      %v418 = vsel %vm402, 1, 0
      %v419 = vsel %vm403, 1, 0
      %v420 = vsel %vm404, 1, 0
      %v421 = vcvt.s32.f32 %v405
      %v422 = vcvt.s32.f32 %v406
      %v423 = vcvt.s32.f32 %v407
      %v424 = vcvt.s32.f32 %v408
      %v425 = vcvt.s32.f32 %v409
      %v426 = vcvt.s32.f32 %v410
      %v427 = vcvt.s32.f32 %v411
      %v428 = vcvt.s32.f32 %v412
      %v429 = vcvt.s32.f32 %v413
      %v430 = vcvt.s32.f32 %v414
      %v431 = vcvt.s32.f32 %v415
      %v432 = vcvt.s32.f32 %v416
      %v433 = vcvt.s32.f32 %v417
      %v434 = vcvt.s32.f32 %v418
      %v435 = vcvt.s32.f32 %v419
      %v436 = vcvt.s32.f32 %v420
      %vm437 = vcmp.ge.f32.partialorder %v349, 0.5
      %vm438 = vcmp.ge.f32.partialorder %v350, 0.5
      %vm439 = vcmp.ge.f32.partialorder %v351, 0.5
      %vm440 = vcmp.ge.f32.partialorder %v352, 0.5
      %vm441 = vcmp.ge.f32.partialorder %v353, 0.5
      %vm442 = vcmp.ge.f32.partialorder %v354, 0.5
      %vm443 = vcmp.ge.f32.partialorder %v355, 0.5
      %vm444 = vcmp.ge.f32.partialorder %v356, 0.5
      %vm445 = vcmp.ge.f32.partialorder %v357, 0.5
      %vm446 = vcmp.ge.f32.partialorder %v358, 0.5
      %vm447 = vcmp.ge.f32.partialorder %v359, 0.5
      %vm448 = vcmp.ge.f32.partialorder %v360, 0.5
      %vm449 = vcmp.ge.f32.partialorder %v361, 0.5
      %vm450 = vcmp.ge.f32.partialorder %v362, 0.5
      %vm451 = vcmp.ge.f32.partialorder %v363, 0.5
      %vm452 = vcmp.ge.f32.partialorder %v364, 0.5
      %v453 = vsub.f32 1.0, %v349
      %v454 = vsub.f32 1.0, %v350
      %v455 = vsub.f32 1.0, %v351
      %v456 = vsub.f32 1.0, %v352
      %v457 = vsub.f32 1.0, %v353
      %v458 = vsub.f32 1.0, %v354
      %v459 = vsub.f32 1.0, %v355
      %v460 = vsub.f32 1.0, %v356
      %v461 = vsub.f32 1.0, %v357
      %v462 = vsub.f32 1.0, %v358
      %v463 = vsub.f32 1.0, %v359
      %v464 = vsub.f32 1.0, %v360
      %v465 = vsub.f32 1.0, %v361
      %v466 = vsub.f32 1.0, %v362
      %v467 = vsub.f32 1.0, %v363
      %v468 = vsub.f32 1.0, %v364
      %v469 = vsel %vm389, %v349, %v453
      %v470 = vsel %vm390, %v350, %v454
      %v471 = vsel %vm391, %v351, %v455
      %v472 = vsel %vm392, %v352, %v456
      %v473 = vsel %vm393, %v353, %v457
      %v474 = vsel %vm394, %v354, %v458
      %v475 = vsel %vm395, %v355, %v459
      %v476 = vsel %vm396, %v356, %v460
      %v477 = vsel %vm397, %v357, %v461
      %v478 = vsel %vm398, %v358, %v462
      %v479 = vsel %vm399, %v359, %v463
      %v480 = vsel %vm400, %v360, %v464
      %v481 = vsel %vm401, %v361, %v465
      %v482 = vsel %vm402, %v362, %v466
      %v483 = vsel %vm403, %v363, %v467
      %v484 = vsel %vm404, %v364, %v468
      %v485 = vld [vmem:[#allocation7] sm:$0xff]
      %v486 = vlog2.pop %v469
      %v487 = vmul.f32 %v486, 0.6931472
      %v488 = vlog2.pop %v470
      %v489 = vmul.f32 %v488, 0.6931472
      %v490 = vlog2.pop %v471
      %v491 = vmul.f32 %v490, 0.6931472
      %v492 = vlog2.pop %v472
      %v493 = vmul.f32 %v492, 0.6931472
      %v494 = vlog2.pop %v473
      %v495 = vmul.f32 %v494, 0.6931472
      %v496 = vlog2.pop %v474
      %v497 = vmul.f32 %v496, 0.6931472
      %v498 = vlog2.pop %v475
      %v499 = vmul.f32 %v498, 0.6931472
      %v500 = vlog2.pop %v476
      %v501 = vmul.f32 %v500, 0.6931472
      %v502 = vlog2.pop %v477
      %v503 = vmul.f32 %v502, 0.6931472
      %v504 = vlog2.pop %v478
      %v505 = vmul.f32 %v504, 0.6931472
      %v506 = vlog2.pop %v479
      %v507 = vmul.f32 %v506, 0.6931472
      %v508 = vlog2.pop %v480
      %v509 = vmul.f32 %v508, 0.6931472
      %v510 = vlog2.pop %v481
      %v511 = vmul.f32 %v510, 0.6931472
      %v512 = vlog2.pop %v482
      %v513 = vmul.f32 %v512, 0.6931472
      %v514 = vlog2.pop %v483
      %v515 = vmul.f32 %v514, 0.6931472
      %v516 = vlog2.pop %v484
      %v517 = vmul.f32 %v516, 0.6931472
      %v518 = vmax.f32 %v487, -100.0
      %v519 = vmax.f32 %v489, -100.0
      %v520 = vmax.f32 %v491, -100.0
      %v521 = vmax.f32 %v493, -100.0
      %v522 = vmax.f32 %v495, -100.0
      %v523 = vmax.f32 %v497, -100.0
      %v524 = vmax.f32 %v499, -100.0
      %v525 = vmax.f32 %v501, -100.0
      %v526 = vmax.f32 %v503, -100.0
      %v527 = vmax.f32 %v505, -100.0
      %v528 = vmax.f32 %v507, -100.0
      %v529 = vmax.f32 %v509, -100.0
      %v530 = vmax.f32 %v511, -100.0
      %v531 = vmax.f32 %v513, -100.0
      %v532 = vmax.f32 %v515, -100.0
      %v533 = vmax.f32 %v517, -100.0
      %v534 = vadd.f32 %v518, %v519
      %v535 = vadd.f32 %v534, %v520
      %v536 = vadd.f32 %v535, %v521
      %v537 = vadd.f32 %v536, %v522
      %v538 = vadd.f32 %v537, %v523
      %v539 = vadd.f32 %v538, %v524
      %v540 = vadd.f32 %v539, %v525
      %v541 = vadd.f32 %v540, %v526
      %v542 = vadd.f32 %v541, %v527
      %v543 = vadd.f32 %v542, %v528
      %v544 = vadd.f32 %v543, %v529
      %v545 = vadd.f32 %v544, %v530
      %v546 = vadd.f32 %v545, %v531
      %v547 = vadd.f32 %v546, %v532
      %v548 = vadd.f32 %v547, %v533
      %549 = vadd.xlane.f32.xlu0 %v548
      %v550 = vpop.xlane.xlu0 %549
      %v551 = vadd.f32 %v485, %v550
      %vm552 = vcmask 7168
      %553 = vst.msk [vmem:[#allocation7] sm:$0xff] %vm552, %v551
      %v554 = vld [vmem:[#allocation2] sm:$0xff]
      %v555 = vmul.f32 %v349, %v421
      %v556 = vmul.f32 %v350, %v422
      %v557 = vmul.f32 %v351, %v423
      %v558 = vmul.f32 %v352, %v424
      %v559 = vmul.f32 %v353, %v425
      %v560 = vmul.f32 %v354, %v426
      %v561 = vmul.f32 %v355, %v427
      %v562 = vmul.f32 %v356, %v428
      %v563 = vmul.f32 %v357, %v429
      %v564 = vmul.f32 %v358, %v430
      %v565 = vmul.f32 %v359, %v431
      %v566 = vmul.f32 %v360, %v432
      %v567 = vmul.f32 %v361, %v433
      %v568 = vmul.f32 %v362, %v434
      %v569 = vmul.f32 %v363, %v435
      %v570 = vmul.f32 %v364, %v436
      %v571 = vadd.f32 %v555, %v556
      %v572 = vadd.f32 %v571, %v557
      %v573 = vadd.f32 %v572, %v558
      %v574 = vadd.f32 %v573, %v559
      %v575 = vadd.f32 %v574, %v560
      %v576 = vadd.f32 %v575, %v561
      %v577 = vadd.f32 %v576, %v562
      %v578 = vadd.f32 %v577, %v563
      %v579 = vadd.f32 %v578, %v564
      %v580 = vadd.f32 %v579, %v565
      %v581 = vadd.f32 %v580, %v566
      %v582 = vadd.f32 %v581, %v567
      %v583 = vadd.f32 %v582, %v568
      %v584 = vadd.f32 %v583, %v569
      %v585 = vadd.f32 %v584, %v570
      %586 = vadd.xlane.f32.xlu0 %v585
      %v587 = vpop.xlane.xlu0 %586
      %v588 = vadd.f32 %v554, %v587
      %589 = vst.msk [vmem:[#allocation2] sm:$0xff] %vm552, %v588
      %v590 = vld [vmem:[#allocation3] sm:$0xff]
      %v591 = vadd.f32 %v349, %v350
      %v592 = vadd.f32 %v591, %v351
      %v593 = vadd.f32 %v592, %v352
      %v594 = vadd.f32 %v593, %v353
      %v595 = vadd.f32 %v594, %v354
      %v596 = vadd.f32 %v595, %v355
      %v597 = vadd.f32 %v596, %v356
      %v598 = vadd.f32 %v597, %v357
      %v599 = vadd.f32 %v598, %v358
      %v600 = vadd.f32 %v599, %v359
      %v601 = vadd.f32 %v600, %v360
      %v602 = vadd.f32 %v601, %v361
      %v603 = vadd.f32 %v602, %v362
      %v604 = vadd.f32 %v603, %v363
      %v605 = vadd.f32 %v604, %v364
      %606 = vadd.xlane.f32.xlu0 %v605
      %v607 = vpop.xlane.xlu0 %606
      %v608 = vadd.f32 %v590, %v607
      %609 = vst.msk [vmem:[#allocation3] sm:$0xff] %vm552, %v608
      %v610 = vld [vmem:[#allocation4] sm:$0xff]
      %v611 = vadd.f32 %v421, %v422
      %v612 = vadd.f32 %v611, %v423
      %v613 = vadd.f32 %v612, %v424
      %v614 = vadd.f32 %v613, %v425
      %v615 = vadd.f32 %v614, %v426
      %v616 = vadd.f32 %v615, %v427
      %v617 = vadd.f32 %v616, %v428
      %v618 = vadd.f32 %v617, %v429
      %v619 = vadd.f32 %v618, %v430
      %v620 = vadd.f32 %v619, %v431
      %v621 = vadd.f32 %v620, %v432
      %v622 = vadd.f32 %v621, %v433
      %v623 = vadd.f32 %v622, %v434
      %v624 = vadd.f32 %v623, %v435
      %v625 = vadd.f32 %v624, %v436
      %626 = vadd.xlane.f32.xlu0 %v625
      %v627 = vpop.xlane.xlu0 %626
      %v628 = vadd.f32 %v610, %v627
      %629 = vst.msk [vmem:[#allocation4] sm:$0xff] %vm552, %v628
      %v630 = vld [vmem:[#allocation5] sm:$0xff]
      %vm631 = vmand %vm437, %vm389
      %vm632 = vmand %vm438, %vm390
      %vm633 = vmand %vm439, %vm391
      %vm634 = vmand %vm440, %vm392
      %vm635 = vmand %vm441, %vm393
      %vm636 = vmand %vm442, %vm394
      %vm637 = vmand %vm443, %vm395
      %vm638 = vmand %vm444, %vm396
      %vm639 = vmand %vm445, %vm397
      %vm640 = vmand %vm446, %vm398
      %vm641 = vmand %vm447, %vm399
      %vm642 = vmand %vm448, %vm400
      %vm643 = vmand %vm449, %vm401
      %vm644 = vmand %vm450, %vm402
      %vm645 = vmand %vm451, %vm403
      %vm646 = vmand %vm452, %vm404
      %v647 = vsel %vm631, 1, 0
      %v648 = vsel %vm632, 1, 0
      %v649 = vsel %vm633, 1, 0
      %v650 = vsel %vm634, 1, 0
      %v651 = vsel %vm635, 1, 0
      %v652 = vsel %vm636, 1, 0
      %v653 = vsel %vm637, 1, 0
      %v654 = vsel %vm638, 1, 0
      %v655 = vsel %vm639, 1, 0
      %v656 = vsel %vm640, 1, 0
      %v657 = vsel %vm641, 1, 0
      %v658 = vsel %vm642, 1, 0
      %v659 = vsel %vm643, 1, 0
      %v660 = vsel %vm644, 1, 0
      %v661 = vsel %vm645, 1, 0
      %v662 = vsel %vm646, 1, 0
      %v663 = vcvt.s32.f32 %v647
      %v664 = vcvt.s32.f32 %v648
      %v665 = vcvt.s32.f32 %v649
      %v666 = vcvt.s32.f32 %v650
      %v667 = vcvt.s32.f32 %v651
      %v668 = vcvt.s32.f32 %v652
      %v669 = vcvt.s32.f32 %v653
      %v670 = vcvt.s32.f32 %v654
      %v671 = vcvt.s32.f32 %v655
      %v672 = vcvt.s32.f32 %v656
      %v673 = vcvt.s32.f32 %v657
      %v674 = vcvt.s32.f32 %v658
      %v675 = vcvt.s32.f32 %v659
      %v676 = vcvt.s32.f32 %v660
      %v677 = vcvt.s32.f32 %v661
      %v678 = vcvt.s32.f32 %v662
      %v679 = vadd.f32 %v663, %v664
      %v680 = vadd.f32 %v679, %v665
      %v681 = vadd.f32 %v680, %v666
      %v682 = vadd.f32 %v681, %v667
      %v683 = vadd.f32 %v682, %v668
      %v684 = vadd.f32 %v683, %v669
      %v685 = vadd.f32 %v684, %v670
      %v686 = vadd.f32 %v685, %v671
      %v687 = vadd.f32 %v686, %v672
      %v688 = vadd.f32 %v687, %v673
      %v689 = vadd.f32 %v688, %v674
      %v690 = vadd.f32 %v689, %v675
      %v691 = vadd.f32 %v690, %v676
      %v692 = vadd.f32 %v691, %v677
      %v693 = vadd.f32 %v692, %v678
      %694 = vadd.xlane.f32.xlu0 %v693
      %v695 = vpop.xlane.xlu0 %694
      %v696 = vadd.f32 %v630, %v695
      %697 = vst.msk [vmem:[#allocation5] sm:$0xff] %vm552, %v696
      %v698 = vld [vmem:[#allocation6] sm:$0xff]
      %v699 = vsel %vm437, 1, 0
      %v700 = vsel %vm438, 1, 0
      %v701 = vsel %vm439, 1, 0
      %v702 = vsel %vm440, 1, 0
      %v703 = vsel %vm441, 1, 0
      %v704 = vsel %vm442, 1, 0
      %v705 = vsel %vm443, 1, 0
      %v706 = vsel %vm444, 1, 0
      %v707 = vsel %vm445, 1, 0
      %v708 = vsel %vm446, 1, 0
      %v709 = vsel %vm447, 1, 0
      %v710 = vsel %vm448, 1, 0
      %v711 = vsel %vm449, 1, 0
      %v712 = vsel %vm450, 1, 0
      %v713 = vsel %vm451, 1, 0
      %v714 = vsel %vm452, 1, 0
      %v715 = vcvt.s32.f32 %v699
      %v716 = vcvt.s32.f32 %v700
      %v717 = vcvt.s32.f32 %v701
      %v718 = vcvt.s32.f32 %v702
      %v719 = vcvt.s32.f32 %v703
      %v720 = vcvt.s32.f32 %v704
      %v721 = vcvt.s32.f32 %v705
      %v722 = vcvt.s32.f32 %v706
      %v723 = vcvt.s32.f32 %v707
      %v724 = vcvt.s32.f32 %v708
      %v725 = vcvt.s32.f32 %v709
      %v726 = vcvt.s32.f32 %v710
      %v727 = vcvt.s32.f32 %v711
      %v728 = vcvt.s32.f32 %v712
      %v729 = vcvt.s32.f32 %v713
      %v730 = vcvt.s32.f32 %v714
      %v731 = vadd.f32 %v715, %v716
      %v732 = vadd.f32 %v731, %v717
      %v733 = vadd.f32 %v732, %v718
      %v734 = vadd.f32 %v733, %v719
      %v735 = vadd.f32 %v734, %v720
      %v736 = vadd.f32 %v735, %v721
      %v737 = vadd.f32 %v736, %v722
      %v738 = vadd.f32 %v737, %v723
      %v739 = vadd.f32 %v738, %v724
      %v740 = vadd.f32 %v739, %v725
      %v741 = vadd.f32 %v740, %v726
      %v742 = vadd.f32 %v741, %v727
      %v743 = vadd.f32 %v742, %v728
      %v744 = vadd.f32 %v743, %v729
      %v745 = vadd.f32 %v744, %v730
      %746 = vadd.xlane.f32.xlu0 %v745
      %v747 = vpop.xlane.xlu0 %746
      %v748 = vadd.f32 %v698, %v747
      %749 = vst.msk [vmem:[#allocation6] sm:$0xff] %vm552, %v748
      %p750 = scmp.eq.s32.totalorder %s21, 1
      // Predicated region
      $region45: #{cp_loss_forward.1} parent=39 // pred_check
        %p751 = pneg %p750
      $region46: #{cp_loss_forward.1} parent=39 // pred_check_branch
        %753 = sbr.rel (%p751) target = $region48
      $region47: #{cp_loss_forward.1} parent=39 // pred_region
        %v754 = vld [vmem:[%s306] sm:$0xff]
        %v755 = vld [vmem:[%s306 + $0x8] sm:$0xff]
        %v756 = vld [vmem:[%s306 + $0x10] sm:$0x1]
        %v757 = vld [vmem:[%s309] sm:$0x1]
        %vm758 = vcmask 64512
        %v759 = vsel %vm758, %v754, -inf
        %v760 = vsel %vm758, %v755, -inf
        %vm761 = vcmask 57344
        %v762 = vsel %vm761, %v756, -inf
        %v763 = vmax.f32 %v759, %v760
        %v764 = vmax.f32 %v763, %v762
        %v765 = vrot.slane %v764, 4
        %v766 = vmax.f32 %v764, %v765
        %v767 = vrot.slane %v766, 2
        %v768 = vmax.f32 %v766, %v767
        %v769 = vrot.slane %v768, 1
        %v770 = vmax.f32 %v768, %v769
        %v771 = vsub.f32 %v754, %v770
        %v772 = vsub.f32 %v755, %v770
        %v773 = vsub.f32 %v756, %v770
        %v774 = vmul.f32 %v771, 1.442695
        %v775 = vpow.pop %v774
        %v776 = vmul.f32 %v772, 1.442695
        %v777 = vpow.pop %v776
        %v778 = vmul.f32 %v773, 1.442695
        %v779 = vpow.pop %v778
        %v780 = vsel %vm758, %v775, 0.0
        %v781 = vsel %vm758, %v777, 0.0
        %v782 = vadd.f32 %v780, %v781
        %v783 = vsel %vm761, %v779, 0.0
        %v784 = vadd.f32 %v782, %v783
        %v785 = vrot.slane %v784, 4
        %v786 = vadd.f32 %v784, %v785
        %v787 = vrot.slane %v786, 2
        %v788 = vadd.f32 %v786, %v787
        %v789 = vrot.slane %v788, 1
        %v790 = vadd.f32 %v788, %v789
        %v791 = vlog2.pop %v790
        %v792 = vmul.f32 %v791, 0.6931472
        %v793 = vadd.f32 %v792, %v770
        %v794 = vlaneseq
        %v795 = vshrl.u32 %v794, 7
        %v796 = vadd.s32 %v795, 8
        %v797 = vadd.s32 %v795, 16
        %v798 = vperm.slane %v757, 0
        %vm799 = vcmp.eq.s32.totalorder %v795, %v798
        %vm800 = vcmp.eq.s32.totalorder %v796, %v798
        %vm801 = vcmp.eq.s32.totalorder %v797, %v798
        %v802 = vsel %vm799, %v754, 0.0
        %v803 = vsel %vm800, %v755, 0.0
        %v804 = vsel %vm801, %v756, 0.0
        %v805 = vsel %vm758, %v802, 0.0
        %v806 = vsel %vm758, %v803, 0.0
        %v807 = vadd.f32 %v805, %v806
        %v808 = vsel %vm761, %v804, 0.0
        %v809 = vadd.f32 %v807, %v808
        %v810 = vrot.slane %v809, 4
        %v811 = vadd.f32 %v809, %v810
        %v812 = vrot.slane %v811, 2
        %v813 = vadd.f32 %v811, %v812
        %v814 = vrot.slane %v813, 1
        %v815 = vadd.f32 %v813, %v814
        %v816 = vsub.f32 %v793, %v815
        %v817 = vsel %vm761, %v816, 0.0
        %818 = vadd.xlane.f32.xlu0 %v817
        %v819 = vpop.xlane.xlu0 %818
        %v820 = vrot.slane %v819, 4
        %v821 = vadd.f32 %v819, %v820
        %v822 = vrot.slane %v821, 2
        %v823 = vadd.f32 %v821, %v822
        %v824 = vrot.slane %v823, 1
        %v825 = vadd.f32 %v823, %v824
        %s826 = vtos %v825
        %s827 = smul.f32 %s826, 0.125
        %v828 = vld [vmem:[#allocation2] sm:$0xff]
        %v829 = vld [vmem:[#allocation3] sm:$0xff]
        %v830 = vld [vmem:[#allocation4] sm:$0xff]
        %v831 = vld [vmem:[#allocation5] sm:$0xff]
        %v832 = vld [vmem:[#allocation6] sm:$0xff]
        %v833 = vld [vmem:[#allocation7] sm:$0xff]
        %v834 = vsel %vm552, %v833, 0.0
        %835 = vadd.xlane.f32.xlu0 %v834
        %v836 = vpop.xlane.xlu0 %835
        %v837 = vrot.slane %v836, 4
        %v838 = vadd.f32 %v836, %v837
        %v839 = vrot.slane %v838, 2
        %v840 = vadd.f32 %v838, %v839
        %v841 = vrot.slane %v840, 1
        %v842 = vadd.f32 %v840, %v841
        %s843 = vtos %v842
        %s844 = ssub.f32 0.0, %s843
        %v845 = vrcp.pop 32768.0
        %v846 = vmul.f32 32768.0, %v845
        %v847 = vsub.f32 1.0, %v846
        %v848 = vmul.f32 %v845, %v847
        %v849 = vadd.f32 %v845, %v848
        %vm850 = vweird.f32 %v845
        %v851 = vsel %vm850, %v845, %v849
        %s852 = vtos %v851
        %s853 = smul.f32 %s844, %s852
        %v854 = vmul.f32 %v828, 2.0
        %v855 = vadd.f32 %v854, 1.0
        %v856 = vadd.f32 %v829, %v830
        %v857 = vadd.f32 %v856, 1.0
        %v858 = vrcp.pop %v857
        %v859 = vmul.f32 %v857, %v858
        %v860 = vsub.f32 1.0, %v859
        %v861 = vmul.f32 %v858, %v860
        %v862 = vadd.f32 %v858, %v861
        %vm863 = vweird.f32 %v857
        %vm864 = vweird.f32 %v858
        %vm865 = vmor %vm863, %vm864
        %v866 = vsel %vm865, %v858, %v862
        %v867 = vand.u32 2147483647, %v857
        %vm868 = vcmp.eq.f32.partialorder %v867, 8.507059e+37
        %v869 = vand.u32 %v857, 2147483648
        %v870 = vor.u32 1.1754944e-38, %v869
        %v871 = vsel %vm868, %v870, %v866
        %v872 = vmul.f32 %v855, %v871
        %v873 = vsub.f32 1.0, %v872
        %v874 = vsel %vm552, %v873, 0.0
        %875 = vadd.xlane.f32.xlu0 %v874
        %v876 = vpop.xlane.xlu0 %875
        %v877 = vrot.slane %v876, 4
        %v878 = vadd.f32 %v876, %v877
        %v879 = vrot.slane %v878, 2
        %v880 = vadd.f32 %v878, %v879
        %v881 = vrot.slane %v880, 1
        %v882 = vadd.f32 %v880, %v881
        %s883 = vtos %v882
        %s884 = smul.f32 %s883, 0.125
        %s885 = sadd.f32 %s853, %s884
        %v886 = vadd.f32 %v830, %v832
        %v887 = vsub.f32 %v886, %v831
        %v888 = vadd.f32 %v887, 1e-06
        %v889 = vrcp.pop %v888
        %v890 = vmul.f32 %v888, %v889
        %v891 = vsub.f32 1.0, %v890
        %v892 = vmul.f32 %v889, %v891
        %v893 = vadd.f32 %v889, %v892
        %vm894 = vweird.f32 %v888
        %vm895 = vweird.f32 %v889
        %vm896 = vmor %vm894, %vm895
        %v897 = vsel %vm896, %v889, %v893
        %v898 = vand.u32 2147483647, %v888
        %vm899 = vcmp.eq.f32.partialorder %v898, 8.507059e+37
        %v900 = vand.u32 %v888, 2147483648
        %v901 = vor.u32 1.1754944e-38, %v900
        %v902 = vsel %vm899, %v901, %v897
        %v903 = vmul.f32 %v831, %v902
        %vm904 = vcmp.gt.f32.partialorder %v903, 0.5
        %v905 = vsel %vm904, 1, 0
        %v906 = vcvt.s32.f32 %v905
        %v907 = vld [vmem:[%s333] sm:$0xff]
        %v908 = vsub.f32 %v907, %v903
        %v909 = vmul.f32 %v908, %v908
        %v910 = vsel %vm552, %v906, 0.0
        %911 = vadd.xlane.f32.xlu0 %v910
        %v912 = vpop.xlane.xlu0 %911
        %v913 = vrot.slane %v912, 4
        %v914 = vadd.f32 %v912, %v913
        %v915 = vrot.slane %v914, 2
        %v916 = vadd.f32 %v914, %v915
        %v917 = vrot.slane %v916, 1
        %v918 = vadd.f32 %v916, %v917
        %s919 = vtos %v918
        %p920 = scmp.gt.f32.partialorder %s919, 0.0
        %v921 = vmul.f32 %v906, %v909
        %v922 = vsel %vm552, %v921, 0.0
        %923 = vadd.xlane.f32.xlu0 %v922
        %v924 = vpop.xlane.xlu0 %923
        %v925 = vrot.slane %v924, 4
        %v926 = vadd.f32 %v924, %v925
        %v927 = vrot.slane %v926, 2
        %v928 = vadd.f32 %v926, %v927
        %v929 = vrot.slane %v928, 1
        %v930 = vadd.f32 %v928, %v929
        %s931 = vtos %v930
        %s932 = smax.f32 %s919, 1.0
        %v933 = vstv %s932
        %v934 = vrcp.pop %v933
        %v935 = vmul.f32 %v933, %v934
        %v936 = vsub.f32 1.0, %v935
        %v937 = vmul.f32 %v934, %v936
        %v938 = vadd.f32 %v934, %v937
        %vm939 = vweird.f32 %v933
        %vm940 = vweird.f32 %v934
        %vm941 = vmor %vm939, %vm940
        %v942 = vsel %vm941, %v934, %v938
        %v943 = vand.u32 2147483647, %v933
        %vm944 = vcmp.eq.f32.partialorder %v943, 8.507059e+37
        %v945 = vand.u32 %v933, 2147483648
        %v946 = vor.u32 1.1754944e-38, %v945
        %v947 = vsel %vm944, %v946, %v942
        %s948 = vtos %v947
        %s949 = smul.f32 %s931, %s948
        %s950 = scalar_select %p920, %s949, 0.0
        %s951 = smul.f32 %s885, 10.0
        %s952 = sadd.f32 %s827, %s951
        %s953 = smul.f32 %s950, 10.0
        %s954 = sadd.f32 %s952, %s953
        %v955 = vlaneseq
        %v956 = vand.u32 %v955, 127
        %vm957 = vcmp.eq.s32.totalorder %v795, 0
        %vm958 = vcmp.eq.s32.totalorder %v956, 0
        %vm959 = vmand %vm957, %vm958
        %v960 = vstv %s954
        %v961 = vsel %vm959, %v960, 0.0
        %vm962 = vcmp.eq.s32.totalorder %v956, 1
        %vm963 = vmand %vm957, %vm962
        %v964 = vstv %s827
        %v965 = vsel %vm963, %v964, %v961
        %vm966 = vcmp.eq.s32.totalorder %v956, 2
        %vm967 = vmand %vm957, %vm966
        %v968 = vstv %s885
        %v969 = vsel %vm967, %v968, %v965
        %vm970 = vcmp.eq.s32.totalorder %v956, 3
        %vm971 = vmand %vm957, %vm970
        %v972 = vstv %s950
        %v973 = vsel %vm971, %v972, %v969
        %974 = vst [vmem:[%s337] sm:$0xff] %v973
      $region48: #{cp_loss_forward.1} parent=39 // pred_fallthru
        _
      %p975 = scmp.lt.s32.totalorder %s20, 1
      %s976 = scalar_select %p975, %s20, 1
      %s977 = smul.addr %s976, 8
      %s978 = scalar_lea.vmem %s5, %s977
      // Predicated region
      $region49: #{cp_loss_forward.1} parent=39 // pred_check
        %p979 = pneg %p180
      $region50: #{cp_loss_forward.1} parent=39 // pred_check_branch
        %981 = sbr.rel (%p979) target = $region52
      $region51: #{cp_loss_forward.1} parent=39 // pred_region
        _
      $region52: #{cp_loss_forward.1} parent=39 // pred_fallthru
        _
    $region40: #{cp_loss_forward.1} parent=5 // pred_fallthru
      _
    %p982 = scmp.le.s32.totalorder 2, %s11
    // Predicated region
    $region53: #{cp_loss_forward.1} parent=5 // pred_check
      %p983 = pneg %p982
    $region54: #{cp_loss_forward.1} parent=5 // pred_check_branch
      %985 = sbr.rel (%p983) target = $region56
    $region55: #{cp_loss_forward.1} parent=5 // pred_region
      %s986 = ssub.s32 %s11, 2
      // Predicated region
      $region57: #{cp_loss_forward.1} parent=55 // pred_check
        %p987 = pneg %p186
      $region58: #{cp_loss_forward.1} parent=55 // pred_check_branch
        %989 = sbr.rel (%p987) target = $region60
      $region59: #{cp_loss_forward.1} parent=55 // pred_region
        %p990 = scmp.lt.s32.totalorder %s22, 1
        %s991 = scalar_select %p990, %s22, 1
        %s992 = smul.addr %s991, 8
        %s993 = scalar_lea.vmem %s5, %s992
      $region60: #{cp_loss_forward.1} parent=55 // pred_fallthru
        _
    $region56: #{cp_loss_forward.1} parent=5 // pred_fallthru
      _
  $region6: #{cp_loss_forward.1} parent=0 // loop_footer
    %s15 = sadd.s32 1, %s11
  $region7: #{cp_loss_forward.1} parent=0 // loop_footer_branch
    %10 = sbr.rel target = $region3
  $region8: #{cp_loss_forward.1} parent=0 // loop_exit
    _

</llo_original>
